<compile_context>
chip_gen: v5e
topology: v5e:2x2
jax: 0.10.0
libtpu: 0.0.40
codegen_flags: <defaults>
</compile_context>

<pallas_src>
import functools

import jax
import jax.numpy as jnp
from jax import lax
from jax.experimental import pallas as pl
from jax.experimental.pallas import tpu as pltpu


def _round_up(x, m):
    return (x + m - 1) // m * m


def _gru_fc_kernel(x_ref, len_ref, wi_ref, wh_ref, bx_ref, bhn_ref, wfc_ref, bfc_ref,
                   out_ref, h_ref, gx_ref, mask_ref, *, unroll):
    """Grid = (batch_block, time_block). The recurrence runs in an in-kernel fori_loop.

    x_ref   : (TB, Bb, Ep) bf16  embeddings for this time-block / batch-block
    len_ref : (Bb, 1) int32      valid lengths
    wi_ref  : (Ep, 3*Hp) bf16    fused input projection  [W_ir | W_iz | W_in]
    wh_ref  : (Hp, 3*Hp) bf16    fused hidden projection [W_hr | W_hz | W_hn]
    bx_ref  : (1, 3*Hp) f32      fused bias [b_ir+b_hr | b_iz+b_hz | b_in]
    bhn_ref : (1, Hp) f32        hidden bias of the n gate (r * (W_hn h + b_hn))
    wfc_ref : (Hp, 1) f32, bfc_ref : (1, 1) f32   final Linear
    h_ref   : (Bb, Hp) f32       VMEM hidden-state carry across time-blocks
    gx_ref  : (TB, Bb, 3*Hp) f32 hoisted input-projection scratch
    mask_ref: (TB, Bb, 1) f32    per-step validity masks
    """
    tb = pl.program_id(1)
    TB, Bb, Ep = x_ref.shape
    Hp = wh_ref.shape[0]

    @pl.when(tb == 0)
    def _():
        h_ref[...] = jnp.zeros_like(h_ref)

    # ---- h-independent work, hoisted off the serial chain ----------------------------
    # One large input-projection matmul per time-block (bf16 operands, f32 accumulate).
    x_blk = x_ref[...]                                            # (TB, Bb, Ep) bf16
    gx = jnp.dot(x_blk.reshape(TB * Bb, Ep), wi_ref[...],
                 preferred_element_type=jnp.float32)              # (TB*Bb, 3Hp) f32
    gx_ref[...] = (gx + bx_ref[...]).reshape(TB, Bb, 3 * Hp)

    # Packed-sequence validity masks for this block, computed once (not per unrolled step).
    t0 = tb * TB
    t_iota = lax.broadcasted_iota(jnp.int32, (TB, Bb, 1), 0)
    mask_ref[...] = ((t0 + t_iota) < len_ref[...][None, :, :]).astype(jnp.float32)

    bhn = bhn_ref[...]                                            # (1, Hp) f32, hoisted

    # ---- serial recurrence: only the h @ W_h matmul + gate math per step --------------
    def step(i, h):
        gx_t = gx_ref[i]                                          # (Bb, 3Hp) f32
        gh = jnp.dot(h.astype(jnp.bfloat16), wh_ref[...],
                     preferred_element_type=jnp.float32)          # (Bb, 3Hp) f32
        r = jax.nn.sigmoid(gx_t[:, 0:Hp] + gh[:, 0:Hp])
        z = jax.nn.sigmoid(gx_t[:, Hp:2 * Hp] + gh[:, Hp:2 * Hp])
        n = jnp.tanh(gx_t[:, 2 * Hp:3 * Hp] + r * (gh[:, 2 * Hp:3 * Hp] + bhn))
        h_new = (1.0 - z) * n + z * h
        m = mask_ref[i]                                           # (Bb, 1) f32 0/1
        return h + m * (h_new - h)                                # only advance valid rows

    h_ref[...] = lax.fori_loop(0, TB, step, h_ref[...], unroll=unroll)

    # Final time-block: fc1 + sigmoid on h_n
    @pl.when(tb == pl.num_programs(1) - 1)
    def _():
        logits = jnp.dot(h_ref[...], wfc_ref[...],
                         preferred_element_type=jnp.float32) + bfc_ref[...]
        out_ref[...] = jax.nn.sigmoid(logits)


def _pack_params(params, Ep, Hp):
    """Fuse per-gate weights/biases into lane-aligned operands (zero-padded, bf16 weights)."""
    E, H = params["w_ir"].shape
    pe, ph = Ep - E, Hp - H
    pad_eh = lambda w: jnp.pad(w, ((0, pe), (0, ph)))   # (Ep, Hp)
    pad_hh = lambda w: jnp.pad(w, ((0, ph), (0, ph)))   # (Hp, Hp)
    pad_h = lambda b: jnp.pad(b, ((0, 0), (0, ph)))     # (1, Hp)

    wi = jnp.concatenate([pad_eh(params["w_ir"]), pad_eh(params["w_iz"]),
                          pad_eh(params["w_in"])], axis=1).astype(jnp.bfloat16)  # (Ep, 3Hp)
    wh = jnp.concatenate([pad_hh(params["w_hr"]), pad_hh(params["w_hz"]),
                          pad_hh(params["w_hn"])], axis=1).astype(jnp.bfloat16)  # (Hp, 3Hp)
    bx = jnp.concatenate([pad_h(params["b_r"]), pad_h(params["b_z"]),
                          pad_h(params["b_in"])], axis=1)                        # (1, 3Hp) f32
    bhn = pad_h(params["b_hn"])                                                  # (1, Hp)  f32
    wfc = jnp.pad(params["w_fc"], ((0, ph), (0, 0)))                             # (Hp, 1)  f32
    bfc = params["b_fc"]                                                         # (1, 1)   f32
    return wi, wh, bx, bhn, wfc, bfc


def rnn_forward(x_idx, lengths, params, *, time_block=64, unroll=8, batch_block=None):
    """x_idx: (T, B) int32 token ids (time-major); lengths: (B,) int32 valid lengths.

    batch_block: set to e.g. Bp//2 on v7x to shard the batch across its 2 TensorCores;
    leave None (single block) on v5e/v6e so the recurrence is not run twice serially.
    """
    emb = params["embedding"]                    # (V, E)
    T, B = x_idx.shape
    E = emb.shape[1]
    H = params["w_hr"].shape[0]

    Hp = _round_up(H, 128)                       # lane-align hidden / gate dims
    Ep = _round_up(E, 128)                       # lane-align embedding dim
    Bp = _round_up(B, 8)                         # sublane-align batch
    if batch_block is None:
        Bb = Bp
    else:
        Bb = _round_up(batch_block, 8)
        Bp = _round_up(Bp, Bb)
    n_bb = Bp // Bb

    TB = min(T, time_block)                      # timesteps per grid step
    Tp = _round_up(T, TB)
    n_tb = Tp // TB
    unroll = max(1, min(unroll, TB))

    # Embedding lookup is a gather -> plain-JAX glue (no clean Pallas gather at this size).
    x_emb = jnp.take(emb, x_idx, axis=0)                                   # (T, B, E) f32
    x_emb = jnp.pad(x_emb, ((0, Tp - T), (0, Bp - B), (0, Ep - E)))
    x_emb = x_emb.astype(jnp.bfloat16)                                     # MXU-native operands
    len_col = jnp.pad(lengths.astype(jnp.int32), (0, Bp - B)).reshape(Bp, 1)

    wi, wh, bx, bhn, wfc, bfc = _pack_params(params, Ep, Hp)

    # Grid-invariant weights: single pipeline buffer once they are big enough for the
    # second buffer to matter for the VMEM budget (v7x: 32 MiB scoped / 64 MiB physical).
    single_buffer_weights = int(wh.size) * 2 > (4 << 20)

    def const_spec(shape):
        idx = lambda bb, tb: (0,) * len(shape)
        if single_buffer_weights:
            return pl.BlockSpec(shape, idx, pipeline_mode=pl.Buffered(1))
        return pl.BlockSpec(shape, idx)

    # Explicit VMEM budget (v5e scoped default is only 16 MiB; v7x 32 MiB of 64 physical).
    needed = (int(wi.size) * 2 + int(wh.size) * 2
              + 4 * (int(bx.size) + int(bhn.size) + int(wfc.size) + int(bfc.size))
              + 2 * TB * Bb * Ep * 2            # double-buffered x block (bf16)
              + TB * Bb * 3 * Hp * 4            # gx scratch
              + TB * Bb * 128 * 4               # mask scratch (lane padded)
              + Bb * Hp * 4                     # hidden carry
              + 4 * Bb * 128 * 4)               # lengths / out blocks
    vmem_limit = int(min(max(2 * needed, 32 * 2**20), 96 * 2**20))
    # TODO(synk): for very large H on v7x also consider bf16 gx scratch; at these shapes
    # the f32 scratch is a few hundred KiB and precision is worth keeping.

    out = pl.pallas_call(
        functools.partial(_gru_fc_kernel, unroll=unroll),
        out_shape=jax.ShapeDtypeStruct((Bp, 1), jnp.float32),
        grid=(n_bb, n_tb),
        in_specs=[
            pl.BlockSpec((TB, Bb, Ep), lambda bb, tb: (tb, bb, 0)),   # x time-block
            pl.BlockSpec((Bb, 1), lambda bb, tb: (bb, 0)),            # lengths
            const_spec((Ep, 3 * Hp)),                                 # fused input proj (bf16)
            const_spec((Hp, 3 * Hp)),                                 # fused hidden proj (bf16)
            const_spec((1, 3 * Hp)),                                  # fused biases [r|z|n]
            const_spec((1, Hp)),                                      # b_hn
            const_spec((Hp, 1)),                                      # fc1 weight
            const_spec((1, 1)),                                       # fc1 bias
        ],
        out_specs=pl.BlockSpec((Bb, 1), lambda bb, tb: (bb, 0)),
        scratch_shapes=[
            pltpu.VMEM((Bb, Hp), jnp.float32),          # hidden-state carry
            pltpu.VMEM((TB, Bb, 3 * Hp), jnp.float32),  # hoisted input-projection block
            pltpu.VMEM((TB, Bb, 1), jnp.float32),       # per-step validity masks
        ],
        compiler_params=pltpu.CompilerParams(
            dimension_semantics=("parallel", "arbitrary"),   # batch parallel, time serial
            vmem_limit_bytes=vmem_limit),
    )(x_emb, len_col, wi, wh, bx, bhn, wfc, bfc)
    return out[:B]


def _reference(x_idx, lengths, params):
    """Pure-JAX f32 reference (unfused, unpadded) for sanity checking the kernel."""
    emb = params["embedding"]
    x_emb = jnp.take(emb, x_idx, axis=0)
    T, B, _ = x_emb.shape
    H = params["w_hr"].shape[0]
    h = jnp.zeros((B, H), jnp.float32)
    for t in range(T):
        x_t = x_emb[t]
        r = jax.nn.sigmoid(x_t @ params["w_ir"] + h @ params["w_hr"] + params["b_r"])
        z = jax.nn.sigmoid(x_t @ params["w_iz"] + h @ params["w_hz"] + params["b_z"])
        n = jnp.tanh(x_t @ params["w_in"] + params["b_in"]
                     + r * (h @ params["w_hn"] + params["b_hn"]))
        h_new = (1.0 - z) * n + z * h
        mask = (t < lengths).reshape(B, 1)
        h = jnp.where(mask, h_new, h)
    return jax.nn.sigmoid(h @ params["w_fc"] + params["b_fc"])


def init_params(key, vocab_size, embedding_dim, hidden_dim):
    assert embedding_dim == hidden_dim, "fc1(embedding_dim,1) applied to h_n requires E == H"
    E, H, V = embedding_dim, hidden_dim, vocab_size
    keys = jax.random.split(key, 16)
    s = 1.0 / jnp.sqrt(H)
    u = lambda k, shape: jax.random.uniform(k, shape, jnp.float32, -s, s)
    params = {
        "embedding": jax.random.normal(keys[0], (V, E), jnp.float32),
        # GRU weights pre-transposed to (in, out) for x @ W layout; gate order r, z, n.
        "w_ir": u(keys[1], (E, H)), "w_iz": u(keys[2], (E, H)), "w_in": u(keys[3], (E, H)),
        "w_hr": u(keys[4], (H, H)), "w_hz": u(keys[5], (H, H)), "w_hn": u(keys[6], (H, H)),
        # b_r = b_ir + b_hr, b_z = b_iz + b_hz (fusable); b_in / b_hn must stay split.
        "b_r": u(keys[7], (1, H)) + u(keys[8], (1, H)),
        "b_z": u(keys[9], (1, H)) + u(keys[10], (1, H)),
        "b_in": u(keys[11], (1, H)),
        "b_hn": u(keys[12], (1, H)),
        "w_fc": u(keys[13], (H, 1)),
        "b_fc": u(keys[14], (1, 1)),
    }
    return params


if __name__ == "__main__":
    key = jax.random.PRNGKey(0)
    T, B, V, E, H = 8, 8, 50, 32, 32   # seq=8, batch=8, vocab=50, embed=hidden=32

    k_par, k_idx = jax.random.split(key)
    params = init_params(k_par, V, E, H)

    x_idx = jax.random.randint(k_idx, (T, B), 0, V, dtype=jnp.int32)   # (T, B) time-major
    lengths = jnp.array([8, 7, 6, 5, 4, 3, 2, 1], dtype=jnp.int32)     # like pack_padded

    out = rnn_forward(x_idx, lengths, params)
    out = jax.block_until_ready(out)

    ref = _reference(x_idx, lengths, params)
    assert out.shape == (B, 1)
    # bf16 matmul operands with f32 accumulation -> relaxed tolerance vs the f32 reference.
    max_err = float(jnp.max(jnp.abs(out - ref)))
    assert jnp.allclose(out, ref, atol=2e-2, rtol=0.0), (max_err, out, ref)

    print("KERNEL_OK")
</pallas_src>

<mosaic_0001>
module attributes {stable_mosaic.version = 11 : i64} {
  func.func @_gru_fc_kernel(%arg0: i32, %arg1: i32, %arg2: memref<8x8x128xbf16, #tpu.memory_space<vmem>>, %arg3: memref<8x1xi32, #tpu.memory_space<vmem>>, %arg4: memref<128x384xbf16, #tpu.memory_space<vmem>>, %arg5: memref<128x384xbf16, #tpu.memory_space<vmem>>, %arg6: memref<1x384xf32, #tpu.memory_space<vmem>>, %arg7: memref<1x128xf32, #tpu.memory_space<vmem>>, %arg8: memref<128x1xf32, #tpu.memory_space<vmem>>, %arg9: memref<1x1xf32, #tpu.memory_space<vmem>>, %arg10: memref<8x1xf32, #tpu.memory_space<vmem>>, %arg11: memref<8x128xf32, #tpu.memory_space<vmem>>, %arg12: memref<8x8x384xf32, #tpu.memory_space<vmem>>, %arg13: memref<8x8x1xf32, #tpu.memory_space<vmem>>) attributes {dimension_semantics = [#tpu.dimension_semantics<parallel>, #tpu.dimension_semantics<arbitrary>], iteration_bounds = array<i64: 1, 1>, scalar_prefetch = 0 : i64, scratch_operands = 3 : i64, tpu.core_type = #tpu.core_type<tc>, window_params = [{transform_indices = @transform_0, window_bounds = array<i64: 8, 8, 128>}, {transform_indices = @transform_1, window_bounds = array<i64: 8, 1>}, {pipeline_mode = #tpu.pipeline_mode<synchronous>, transform_indices = @transform_2, window_bounds = array<i64: 128, 384>}, {pipeline_mode = #tpu.pipeline_mode<synchronous>, transform_indices = @transform_3, window_bounds = array<i64: 128, 384>}, {pipeline_mode = #tpu.pipeline_mode<synchronous>, transform_indices = @transform_4, window_bounds = array<i64: 1, 384>}, {pipeline_mode = #tpu.pipeline_mode<synchronous>, transform_indices = @transform_5, window_bounds = array<i64: 1, 128>}, {pipeline_mode = #tpu.pipeline_mode<synchronous>, transform_indices = @transform_6, window_bounds = array<i64: 128, 1>}, {pipeline_mode = #tpu.pipeline_mode<synchronous>, transform_indices = @transform_7, window_bounds = array<i64: 1, 1>}, {transform_indices = @transform_8, window_bounds = array<i64: 8, 1>}]} {
    %c0_i32 = arith.constant 0 : i32
    %0 = arith.cmpi eq, %arg1, %c0_i32 : i32
    %1 = arith.extui %0 : i1 to i32
    %c0_i32_0 = arith.constant 0 : i32
    %2 = arith.cmpi ne, %1, %c0_i32_0 : i32
    scf.if %2 {
      %cst_105 = arith.constant 0.000000e+00 : f32
      %357 = vector.broadcast %cst_105 : f32 to vector<8x128xf32>
      %c0_106 = arith.constant 0 : index
      %c0_107 = arith.constant 0 : index
      %358 = vector.load %arg11[%c0_106, %c0_107] : memref<8x128xf32, #tpu.memory_space<vmem>>, vector<8x128xf32>
      tpu.vector_store %arg11[%c0_106, %c0_107], %357 {strides = array<i32>} : memref<8x128xf32, #tpu.memory_space<vmem>>, vector<8x128xf32>,
    } else {
    }
    %c0 = arith.constant 0 : index
    %c0_1 = arith.constant 0 : index
    %c0_2 = arith.constant 0 : index
    %3 = vector.load %arg2[%c0, %c0_1, %c0_2] : memref<8x8x128xbf16, #tpu.memory_space<vmem>>, vector<8x8x128xbf16>
    %4 = vector.shape_cast %3 : vector<8x8x128xbf16> to vector<64x128xbf16>
    %c0_3 = arith.constant 0 : index
    %c0_4 = arith.constant 0 : index
    %5 = vector.load %arg4[%c0_3, %c0_4] : memref<128x384xbf16, #tpu.memory_space<vmem>>, vector<128x384xbf16>
    %cst = arith.constant dense<0.000000e+00> : vector<64x384xf32>
    %6 = tpu.matmul %4, %5, %cst {dimension_numbers = #tpu.dot_dimension_numbers<[1], [0], [0], [1], [0, 0, 1, 1], [], []>} : vector<64x128xbf16>, vector<128x384xbf16>, vector<64x384xf32> -> vector<64x384xf32>
    %c0_5 = arith.constant 0 : index
    %c0_6 = arith.constant 0 : index
    %7 = vector.load %arg6[%c0_5, %c0_6] : memref<1x384xf32, #tpu.memory_space<vmem>>, vector<1x384xf32>
    %8 = vector.broadcast %7 : vector<1x384xf32> to vector<64x384xf32>
    %9 = arith.addf %6, %8 : vector<64x384xf32>
    %10 = vector.shape_cast %9 : vector<64x384xf32> to vector<8x8x384xf32>
    %c0_7 = arith.constant 0 : index
    %c0_8 = arith.constant 0 : index
    %c0_9 = arith.constant 0 : index
    %11 = vector.load %arg12[%c0_7, %c0_8, %c0_9] : memref<8x8x384xf32, #tpu.memory_space<vmem>>, vector<8x8x384xf32>
    tpu.vector_store %arg12[%c0_7, %c0_8, %c0_9], %10 {strides = array<i32>} : memref<8x8x384xf32, #tpu.memory_space<vmem>>, vector<8x8x384xf32>,
    %c8_i32 = arith.constant 8 : i32
    %12 = arith.muli %arg1, %c8_i32 : i32
    %13 = tpu.iota {dimensions = array<i32: 0>} : vector<8x8x1xi32>
    %14 = vector.broadcast %12 : i32 to vector<8x8x1xi32>
    %15 = arith.addi %14, %13 : vector<8x8x1xi32>
    %c0_10 = arith.constant 0 : index
    %c0_11 = arith.constant 0 : index
    %16 = vector.load %arg3[%c0_10, %c0_11] : memref<8x1xi32, #tpu.memory_space<vmem>>, vector<8x1xi32>
    %17 = vector.shape_cast %16 : vector<8x1xi32> to vector<1x8x1xi32>
    %18 = vector.broadcast %17 : vector<1x8x1xi32> to vector<8x8x1xi32>
    %19 = arith.cmpi slt, %15, %18 : vector<8x8x1xi32>
    %20 = arith.extui %19 : vector<8x8x1xi1> to vector<8x8x1xi32>
    %21 = arith.sitofp %20 : vector<8x8x1xi32> to vector<8x8x1xf32>
    %c0_12 = arith.constant 0 : index
    %c0_13 = arith.constant 0 : index
    %c0_14 = arith.constant 0 : index
    %22 = vector.load %arg13[%c0_12, %c0_13, %c0_14] : memref<8x8x1xf32, #tpu.memory_space<vmem>>, vector<8x8x1xf32>
    tpu.vector_store %arg13[%c0_12, %c0_13, %c0_14], %21 {strides = array<i32>} : memref<8x8x1xf32, #tpu.memory_space<vmem>>, vector<8x8x1xf32>,
    %c0_15 = arith.constant 0 : index
    %c0_16 = arith.constant 0 : index
    %23 = vector.load %arg7[%c0_15, %c0_16] : memref<1x128xf32, #tpu.memory_space<vmem>>, vector<1x128xf32>
    %c0_17 = arith.constant 0 : index
    %c0_18 = arith.constant 0 : index
    %24 = vector.load %arg11[%c0_17, %c0_18] : memref<8x128xf32, #tpu.memory_space<vmem>>, vector<8x128xf32>
    %c0_i32_19 = arith.constant 0 : i32
    %25 = arith.index_cast %c0_i32_19 : i32 to index
    %c0_20 = arith.constant 0 : index
    %c0_21 = arith.constant 0 : index
    %26 = vector.load %arg12[%25, %c0_20, %c0_21] : memref<8x8x384xf32, #tpu.memory_space<vmem>>, vector<1x8x384xf32>
    %27 = vector.shape_cast %26 : vector<1x8x384xf32> to vector<8x384xf32>
    %28 = arith.truncf %24 : vector<8x128xf32> to vector<8x128xbf16>
    %c0_22 = arith.constant 0 : index
    %c0_23 = arith.constant 0 : index
    %29 = vector.load %arg5[%c0_22, %c0_23] : memref<128x384xbf16, #tpu.memory_space<vmem>>, vector<128x384xbf16>
    %cst_24 = arith.constant dense<0.000000e+00> : vector<8x384xf32>
    %30 = tpu.matmul %28, %29, %cst_24 {dimension_numbers = #tpu.dot_dimension_numbers<[1], [0], [0], [1], [0, 0, 1, 1], [], []>} : vector<8x128xbf16>, vector<128x384xbf16>, vector<8x384xf32> -> vector<8x384xf32>
    %31 = vector.extract_strided_slice %27 {offsets = [0, 0], sizes = [8, 128], strides = [1, 1]} : vector<8x384xf32> to vector<8x128xf32>
    %32 = vector.extract_strided_slice %30 {offsets = [0, 0], sizes = [8, 128], strides = [1, 1]} : vector<8x384xf32> to vector<8x128xf32>
    %33 = arith.addf %31, %32 : vector<8x128xf32>
    %34 = arith.negf %33 : vector<8x128xf32>
    %35 = math.exp %34 : vector<8x128xf32>
    %cst_25 = arith.constant 1.000000e+00 : f32
    %36 = vector.broadcast %cst_25 : f32 to vector<8x128xf32>
    %37 = arith.addf %36, %35 : vector<8x128xf32>
    %38 = arith.divf %36, %37 : vector<8x128xf32>
    %39 = vector.extract_strided_slice %27 {offsets = [0, 128], sizes = [8, 128], strides = [1, 1]} : vector<8x384xf32> to vector<8x128xf32>
    %40 = vector.extract_strided_slice %30 {offsets = [0, 128], sizes = [8, 128], strides = [1, 1]} : vector<8x384xf32> to vector<8x128xf32>
    %41 = arith.addf %39, %40 : vector<8x128xf32>
    %42 = arith.negf %41 : vector<8x128xf32>
    %43 = math.exp %42 : vector<8x128xf32>
    %cst_26 = arith.constant 1.000000e+00 : f32
    %44 = vector.broadcast %cst_26 : f32 to vector<8x128xf32>
    %45 = arith.addf %44, %43 : vector<8x128xf32>
    %46 = arith.divf %44, %45 : vector<8x128xf32>
    %47 = vector.extract_strided_slice %27 {offsets = [0, 256], sizes = [8, 128], strides = [1, 1]} : vector<8x384xf32> to vector<8x128xf32>
    %48 = vector.extract_strided_slice %30 {offsets = [0, 256], sizes = [8, 128], strides = [1, 1]} : vector<8x384xf32> to vector<8x128xf32>
    %49 = vector.broadcast %23 : vector<1x128xf32> to vector<8x128xf32>
    %50 = arith.addf %48, %49 : vector<8x128xf32>
    %51 = arith.mulf %38, %50 : vector<8x128xf32>
    %52 = arith.addf %47, %51 : vector<8x128xf32>
    %53 = math.tanh %52 : vector<8x128xf32>
    %cst_27 = arith.constant 1.000000e+00 : f32
    %54 = vector.broadcast %cst_27 : f32 to vector<8x128xf32>
    %55 = arith.subf %54, %46 : vector<8x128xf32>
    %56 = arith.mulf %55, %53 : vector<8x128xf32>
    %57 = arith.mulf %46, %24 : vector<8x128xf32>
    %58 = arith.addf %56, %57 : vector<8x128xf32>
    %59 = arith.index_cast %c0_i32_19 : i32 to index
    %c0_28 = arith.constant 0 : index
    %c0_29 = arith.constant 0 : index
    %60 = vector.load %arg13[%59, %c0_28, %c0_29] : memref<8x8x1xf32, #tpu.memory_space<vmem>>, vector<1x8x1xf32>
    %61 = vector.shape_cast %60 : vector<1x8x1xf32> to vector<8x1xf32>
    %62 = arith.subf %58, %24 : vector<8x128xf32>
    %63 = vector.broadcast %61 : vector<8x1xf32> to vector<8x128xf32>
    %64 = arith.mulf %63, %62 : vector<8x128xf32>
    %65 = arith.addf %24, %64 : vector<8x128xf32>
    %c1_i32 = arith.constant 1 : i32
    %66 = arith.index_cast %c1_i32 : i32 to index
    %c0_30 = arith.constant 0 : index
    %c0_31 = arith.constant 0 : index
    %67 = vector.load %arg12[%66, %c0_30, %c0_31] : memref<8x8x384xf32, #tpu.memory_space<vmem>>, vector<1x8x384xf32>
    %68 = vector.shape_cast %67 : vector<1x8x384xf32> to vector<8x384xf32>
    %69 = arith.truncf %65 : vector<8x128xf32> to vector<8x128xbf16>
    %c0_32 = arith.constant 0 : index
    %c0_33 = arith.constant 0 : index
    %70 = vector.load %arg5[%c0_32, %c0_33] : memref<128x384xbf16, #tpu.memory_space<vmem>>, vector<128x384xbf16>
    %cst_34 = arith.constant dense<0.000000e+00> : vector<8x384xf32>
    %71 = tpu.matmul %69, %70, %cst_34 {dimension_numbers = #tpu.dot_dimension_numbers<[1], [0], [0], [1], [0, 0, 1, 1], [], []>} : vector<8x128xbf16>, vector<128x384xbf16>, vector<8x384xf32> -> vector<8x384xf32>
    %72 = vector.extract_strided_slice %68 {offsets = [0, 0], sizes = [8, 128], strides = [1, 1]} : vector<8x384xf32> to vector<8x128xf32>
    %73 = vector.extract_strided_slice %71 {offsets = [0, 0], sizes = [8, 128], strides = [1, 1]} : vector<8x384xf32> to vector<8x128xf32>
    %74 = arith.addf %72, %73 : vector<8x128xf32>
    %75 = arith.negf %74 : vector<8x128xf32>
    %76 = math.exp %75 : vector<8x128xf32>
    %cst_35 = arith.constant 1.000000e+00 : f32
    %77 = vector.broadcast %cst_35 : f32 to vector<8x128xf32>
    %78 = arith.addf %77, %76 : vector<8x128xf32>
    %79 = arith.divf %77, %78 : vector<8x128xf32>
    %80 = vector.extract_strided_slice %68 {offsets = [0, 128], sizes = [8, 128], strides = [1, 1]} : vector<8x384xf32> to vector<8x128xf32>
    %81 = vector.extract_strided_slice %71 {offsets = [0, 128], sizes = [8, 128], strides = [1, 1]} : vector<8x384xf32> to vector<8x128xf32>
    %82 = arith.addf %80, %81 : vector<8x128xf32>
    %83 = arith.negf %82 : vector<8x128xf32>
    %84 = math.exp %83 : vector<8x128xf32>
    %cst_36 = arith.constant 1.000000e+00 : f32
    %85 = vector.broadcast %cst_36 : f32 to vector<8x128xf32>
    %86 = arith.addf %85, %84 : vector<8x128xf32>
    %87 = arith.divf %85, %86 : vector<8x128xf32>
    %88 = vector.extract_strided_slice %68 {offsets = [0, 256], sizes = [8, 128], strides = [1, 1]} : vector<8x384xf32> to vector<8x128xf32>
    %89 = vector.extract_strided_slice %71 {offsets = [0, 256], sizes = [8, 128], strides = [1, 1]} : vector<8x384xf32> to vector<8x128xf32>
    %90 = vector.broadcast %23 : vector<1x128xf32> to vector<8x128xf32>
    %91 = arith.addf %89, %90 : vector<8x128xf32>
    %92 = arith.mulf %79, %91 : vector<8x128xf32>
    %93 = arith.addf %88, %92 : vector<8x128xf32>
    %94 = math.tanh %93 : vector<8x128xf32>
    %cst_37 = arith.constant 1.000000e+00 : f32
    %95 = vector.broadcast %cst_37 : f32 to vector<8x128xf32>
    %96 = arith.subf %95, %87 : vector<8x128xf32>
    %97 = arith.mulf %96, %94 : vector<8x128xf32>
    %98 = arith.mulf %87, %65 : vector<8x128xf32>
    %99 = arith.addf %97, %98 : vector<8x128xf32>
    %100 = arith.index_cast %c1_i32 : i32 to index
    %c0_38 = arith.constant 0 : index
    %c0_39 = arith.constant 0 : index
    %101 = vector.load %arg13[%100, %c0_38, %c0_39] : memref<8x8x1xf32, #tpu.memory_space<vmem>>, vector<1x8x1xf32>
    %102 = vector.shape_cast %101 : vector<1x8x1xf32> to vector<8x1xf32>
    %103 = arith.subf %99, %65 : vector<8x128xf32>
    %104 = vector.broadcast %102 : vector<8x1xf32> to vector<8x128xf32>
    %105 = arith.mulf %104, %103 : vector<8x128xf32>
    %106 = arith.addf %65, %105 : vector<8x128xf32>
    %c2_i32 = arith.constant 2 : i32
    %107 = arith.index_cast %c2_i32 : i32 to index
    %c0_40 = arith.constant 0 : index
    %c0_41 = arith.constant 0 : index
    %108 = vector.load %arg12[%107, %c0_40, %c0_41] : memref<8x8x384xf32, #tpu.memory_space<vmem>>, vector<1x8x384xf32>
    %109 = vector.shape_cast %108 : vector<1x8x384xf32> to vector<8x384xf32>
    %110 = arith.truncf %106 : vector<8x128xf32> to vector<8x128xbf16>
    %c0_42 = arith.constant 0 : index
    %c0_43 = arith.constant 0 : index
    %111 = vector.load %arg5[%c0_42, %c0_43] : memref<128x384xbf16, #tpu.memory_space<vmem>>, vector<128x384xbf16>
    %cst_44 = arith.constant dense<0.000000e+00> : vector<8x384xf32>
    %112 = tpu.matmul %110, %111, %cst_44 {dimension_numbers = #tpu.dot_dimension_numbers<[1], [0], [0], [1], [0, 0, 1, 1], [], []>} : vector<8x128xbf16>, vector<128x384xbf16>, vector<8x384xf32> -> vector<8x384xf32>
    %113 = vector.extract_strided_slice %109 {offsets = [0, 0], sizes = [8, 128], strides = [1, 1]} : vector<8x384xf32> to vector<8x128xf32>
    %114 = vector.extract_strided_slice %112 {offsets = [0, 0], sizes = [8, 128], strides = [1, 1]} : vector<8x384xf32> to vector<8x128xf32>
    %115 = arith.addf %113, %114 : vector<8x128xf32>
    %116 = arith.negf %115 : vector<8x128xf32>
    %117 = math.exp %116 : vector<8x128xf32>
    %cst_45 = arith.constant 1.000000e+00 : f32
    %118 = vector.broadcast %cst_45 : f32 to vector<8x128xf32>
    %119 = arith.addf %118, %117 : vector<8x128xf32>
    %120 = arith.divf %118, %119 : vector<8x128xf32>
    %121 = vector.extract_strided_slice %109 {offsets = [0, 128], sizes = [8, 128], strides = [1, 1]} : vector<8x384xf32> to vector<8x128xf32>
    %122 = vector.extract_strided_slice %112 {offsets = [0, 128], sizes = [8, 128], strides = [1, 1]} : vector<8x384xf32> to vector<8x128xf32>
    %123 = arith.addf %121, %122 : vector<8x128xf32>
    %124 = arith.negf %123 : vector<8x128xf32>
    %125 = math.exp %124 : vector<8x128xf32>
    %cst_46 = arith.constant 1.000000e+00 : f32
    %126 = vector.broadcast %cst_46 : f32 to vector<8x128xf32>
    %127 = arith.addf %126, %125 : vector<8x128xf32>
    %128 = arith.divf %126, %127 : vector<8x128xf32>
    %129 = vector.extract_strided_slice %109 {offsets = [0, 256], sizes = [8, 128], strides = [1, 1]} : vector<8x384xf32> to vector<8x128xf32>
    %130 = vector.extract_strided_slice %112 {offsets = [0, 256], sizes = [8, 128], strides = [1, 1]} : vector<8x384xf32> to vector<8x128xf32>
    %131 = vector.broadcast %23 : vector<1x128xf32> to vector<8x128xf32>
    %132 = arith.addf %130, %131 : vector<8x128xf32>
    %133 = arith.mulf %120, %132 : vector<8x128xf32>
    %134 = arith.addf %129, %133 : vector<8x128xf32>
    %135 = math.tanh %134 : vector<8x128xf32>
    %cst_47 = arith.constant 1.000000e+00 : f32
    %136 = vector.broadcast %cst_47 : f32 to vector<8x128xf32>
    %137 = arith.subf %136, %128 : vector<8x128xf32>
    %138 = arith.mulf %137, %135 : vector<8x128xf32>
    %139 = arith.mulf %128, %106 : vector<8x128xf32>
    %140 = arith.addf %138, %139 : vector<8x128xf32>
    %141 = arith.index_cast %c2_i32 : i32 to index
    %c0_48 = arith.constant 0 : index
    %c0_49 = arith.constant 0 : index
    %142 = vector.load %arg13[%141, %c0_48, %c0_49] : memref<8x8x1xf32, #tpu.memory_space<vmem>>, vector<1x8x1xf32>
    %143 = vector.shape_cast %142 : vector<1x8x1xf32> to vector<8x1xf32>
    %144 = arith.subf %140, %106 : vector<8x128xf32>
    %145 = vector.broadcast %143 : vector<8x1xf32> to vector<8x128xf32>
    %146 = arith.mulf %145, %144 : vector<8x128xf32>
    %147 = arith.addf %106, %146 : vector<8x128xf32>
    %c3_i32 = arith.constant 3 : i32
    %148 = arith.index_cast %c3_i32 : i32 to index
    %c0_50 = arith.constant 0 : index
    %c0_51 = arith.constant 0 : index
    %149 = vector.load %arg12[%148, %c0_50, %c0_51] : memref<8x8x384xf32, #tpu.memory_space<vmem>>, vector<1x8x384xf32>
    %150 = vector.shape_cast %149 : vector<1x8x384xf32> to vector<8x384xf32>
    %151 = arith.truncf %147 : vector<8x128xf32> to vector<8x128xbf16>
    %c0_52 = arith.constant 0 : index
    %c0_53 = arith.constant 0 : index
    %152 = vector.load %arg5[%c0_52, %c0_53] : memref<128x384xbf16, #tpu.memory_space<vmem>>, vector<128x384xbf16>
    %cst_54 = arith.constant dense<0.000000e+00> : vector<8x384xf32>
    %153 = tpu.matmul %151, %152, %cst_54 {dimension_numbers = #tpu.dot_dimension_numbers<[1], [0], [0], [1], [0, 0, 1, 1], [], []>} : vector<8x128xbf16>, vector<128x384xbf16>, vector<8x384xf32> -> vector<8x384xf32>
    %154 = vector.extract_strided_slice %150 {offsets = [0, 0], sizes = [8, 128], strides = [1, 1]} : vector<8x384xf32> to vector<8x128xf32>
    %155 = vector.extract_strided_slice %153 {offsets = [0, 0], sizes = [8, 128], strides = [1, 1]} : vector<8x384xf32> to vector<8x128xf32>
    %156 = arith.addf %154, %155 : vector<8x128xf32>
    %157 = arith.negf %156 : vector<8x128xf32>
    %158 = math.exp %157 : vector<8x128xf32>
    %cst_55 = arith.constant 1.000000e+00 : f32
    %159 = vector.broadcast %cst_55 : f32 to vector<8x128xf32>
    %160 = arith.addf %159, %158 : vector<8x128xf32>
    %161 = arith.divf %159, %160 : vector<8x128xf32>
    %162 = vector.extract_strided_slice %150 {offsets = [0, 128], sizes = [8, 128], strides = [1, 1]} : vector<8x384xf32> to vector<8x128xf32>
    %163 = vector.extract_strided_slice %153 {offsets = [0, 128], sizes = [8, 128], strides = [1, 1]} : vector<8x384xf32> to vector<8x128xf32>
    %164 = arith.addf %162, %163 : vector<8x128xf32>
    %165 = arith.negf %164 : vector<8x128xf32>
    %166 = math.exp %165 : vector<8x128xf32>
    %cst_56 = arith.constant 1.000000e+00 : f32
    %167 = vector.broadcast %cst_56 : f32 to vector<8x128xf32>
    %168 = arith.addf %167, %166 : vector<8x128xf32>
    %169 = arith.divf %167, %168 : vector<8x128xf32>
    %170 = vector.extract_strided_slice %150 {offsets = [0, 256], sizes = [8, 128], strides = [1, 1]} : vector<8x384xf32> to vector<8x128xf32>
    %171 = vector.extract_strided_slice %153 {offsets = [0, 256], sizes = [8, 128], strides = [1, 1]} : vector<8x384xf32> to vector<8x128xf32>
    %172 = vector.broadcast %23 : vector<1x128xf32> to vector<8x128xf32>
    %173 = arith.addf %171, %172 : vector<8x128xf32>
    %174 = arith.mulf %161, %173 : vector<8x128xf32>
    %175 = arith.addf %170, %174 : vector<8x128xf32>
    %176 = math.tanh %175 : vector<8x128xf32>
    %cst_57 = arith.constant 1.000000e+00 : f32
    %177 = vector.broadcast %cst_57 : f32 to vector<8x128xf32>
    %178 = arith.subf %177, %169 : vector<8x128xf32>
    %179 = arith.mulf %178, %176 : vector<8x128xf32>
    %180 = arith.mulf %169, %147 : vector<8x128xf32>
    %181 = arith.addf %179, %180 : vector<8x128xf32>
    %182 = arith.index_cast %c3_i32 : i32 to index
    %c0_58 = arith.constant 0 : index
    %c0_59 = arith.constant 0 : index
    %183 = vector.load %arg13[%182, %c0_58, %c0_59] : memref<8x8x1xf32, #tpu.memory_space<vmem>>, vector<1x8x1xf32>
    %184 = vector.shape_cast %183 : vector<1x8x1xf32> to vector<8x1xf32>
    %185 = arith.subf %181, %147 : vector<8x128xf32>
    %186 = vector.broadcast %184 : vector<8x1xf32> to vector<8x128xf32>
    %187 = arith.mulf %186, %185 : vector<8x128xf32>
    %188 = arith.addf %147, %187 : vector<8x128xf32>
    %c4_i32 = arith.constant 4 : i32
    %189 = arith.index_cast %c4_i32 : i32 to index
    %c0_60 = arith.constant 0 : index
    %c0_61 = arith.constant 0 : index
    %190 = vector.load %arg12[%189, %c0_60, %c0_61] : memref<8x8x384xf32, #tpu.memory_space<vmem>>, vector<1x8x384xf32>
    %191 = vector.shape_cast %190 : vector<1x8x384xf32> to vector<8x384xf32>
    %192 = arith.truncf %188 : vector<8x128xf32> to vector<8x128xbf16>
    %c0_62 = arith.constant 0 : index
    %c0_63 = arith.constant 0 : index
    %193 = vector.load %arg5[%c0_62, %c0_63] : memref<128x384xbf16, #tpu.memory_space<vmem>>, vector<128x384xbf16>
    %cst_64 = arith.constant dense<0.000000e+00> : vector<8x384xf32>
    %194 = tpu.matmul %192, %193, %cst_64 {dimension_numbers = #tpu.dot_dimension_numbers<[1], [0], [0], [1], [0, 0, 1, 1], [], []>} : vector<8x128xbf16>, vector<128x384xbf16>, vector<8x384xf32> -> vector<8x384xf32>
    %195 = vector.extract_strided_slice %191 {offsets = [0, 0], sizes = [8, 128], strides = [1, 1]} : vector<8x384xf32> to vector<8x128xf32>
    %196 = vector.extract_strided_slice %194 {offsets = [0, 0], sizes = [8, 128], strides = [1, 1]} : vector<8x384xf32> to vector<8x128xf32>
    %197 = arith.addf %195, %196 : vector<8x128xf32>
    %198 = arith.negf %197 : vector<8x128xf32>
    %199 = math.exp %198 : vector<8x128xf32>
    %cst_65 = arith.constant 1.000000e+00 : f32
    %200 = vector.broadcast %cst_65 : f32 to vector<8x128xf32>
    %201 = arith.addf %200, %199 : vector<8x128xf32>
    %202 = arith.divf %200, %201 : vector<8x128xf32>
    %203 = vector.extract_strided_slice %191 {offsets = [0, 128], sizes = [8, 128], strides = [1, 1]} : vector<8x384xf32> to vector<8x128xf32>
    %204 = vector.extract_strided_slice %194 {offsets = [0, 128], sizes = [8, 128], strides = [1, 1]} : vector<8x384xf32> to vector<8x128xf32>
    %205 = arith.addf %203, %204 : vector<8x128xf32>
    %206 = arith.negf %205 : vector<8x128xf32>
    %207 = math.exp %206 : vector<8x128xf32>
    %cst_66 = arith.constant 1.000000e+00 : f32
    %208 = vector.broadcast %cst_66 : f32 to vector<8x128xf32>
    %209 = arith.addf %208, %207 : vector<8x128xf32>
    %210 = arith.divf %208, %209 : vector<8x128xf32>
    %211 = vector.extract_strided_slice %191 {offsets = [0, 256], sizes = [8, 128], strides = [1, 1]} : vector<8x384xf32> to vector<8x128xf32>
    %212 = vector.extract_strided_slice %194 {offsets = [0, 256], sizes = [8, 128], strides = [1, 1]} : vector<8x384xf32> to vector<8x128xf32>
    %213 = vector.broadcast %23 : vector<1x128xf32> to vector<8x128xf32>
    %214 = arith.addf %212, %213 : vector<8x128xf32>
    %215 = arith.mulf %202, %214 : vector<8x128xf32>
    %216 = arith.addf %211, %215 : vector<8x128xf32>
    %217 = math.tanh %216 : vector<8x128xf32>
    %cst_67 = arith.constant 1.000000e+00 : f32
    %218 = vector.broadcast %cst_67 : f32 to vector<8x128xf32>
    %219 = arith.subf %218, %210 : vector<8x128xf32>
    %220 = arith.mulf %219, %217 : vector<8x128xf32>
    %221 = arith.mulf %210, %188 : vector<8x128xf32>
    %222 = arith.addf %220, %221 : vector<8x128xf32>
    %223 = arith.index_cast %c4_i32 : i32 to index
    %c0_68 = arith.constant 0 : index
    %c0_69 = arith.constant 0 : index
    %224 = vector.load %arg13[%223, %c0_68, %c0_69] : memref<8x8x1xf32, #tpu.memory_space<vmem>>, vector<1x8x1xf32>
    %225 = vector.shape_cast %224 : vector<1x8x1xf32> to vector<8x1xf32>
    %226 = arith.subf %222, %188 : vector<8x128xf32>
    %227 = vector.broadcast %225 : vector<8x1xf32> to vector<8x128xf32>
    %228 = arith.mulf %227, %226 : vector<8x128xf32>
    %229 = arith.addf %188, %228 : vector<8x128xf32>
    %c5_i32 = arith.constant 5 : i32
    %230 = arith.index_cast %c5_i32 : i32 to index
    %c0_70 = arith.constant 0 : index
    %c0_71 = arith.constant 0 : index
    %231 = vector.load %arg12[%230, %c0_70, %c0_71] : memref<8x8x384xf32, #tpu.memory_space<vmem>>, vector<1x8x384xf32>
    %232 = vector.shape_cast %231 : vector<1x8x384xf32> to vector<8x384xf32>
    %233 = arith.truncf %229 : vector<8x128xf32> to vector<8x128xbf16>
    %c0_72 = arith.constant 0 : index
    %c0_73 = arith.constant 0 : index
    %234 = vector.load %arg5[%c0_72, %c0_73] : memref<128x384xbf16, #tpu.memory_space<vmem>>, vector<128x384xbf16>
    %cst_74 = arith.constant dense<0.000000e+00> : vector<8x384xf32>
    %235 = tpu.matmul %233, %234, %cst_74 {dimension_numbers = #tpu.dot_dimension_numbers<[1], [0], [0], [1], [0, 0, 1, 1], [], []>} : vector<8x128xbf16>, vector<128x384xbf16>, vector<8x384xf32> -> vector<8x384xf32>
    %236 = vector.extract_strided_slice %232 {offsets = [0, 0], sizes = [8, 128], strides = [1, 1]} : vector<8x384xf32> to vector<8x128xf32>
    %237 = vector.extract_strided_slice %235 {offsets = [0, 0], sizes = [8, 128], strides = [1, 1]} : vector<8x384xf32> to vector<8x128xf32>
    %238 = arith.addf %236, %237 : vector<8x128xf32>
    %239 = arith.negf %238 : vector<8x128xf32>
    %240 = math.exp %239 : vector<8x128xf32>
    %cst_75 = arith.constant 1.000000e+00 : f32
    %241 = vector.broadcast %cst_75 : f32 to vector<8x128xf32>
    %242 = arith.addf %241, %240 : vector<8x128xf32>
    %243 = arith.divf %241, %242 : vector<8x128xf32>
    %244 = vector.extract_strided_slice %232 {offsets = [0, 128], sizes = [8, 128], strides = [1, 1]} : vector<8x384xf32> to vector<8x128xf32>
    %245 = vector.extract_strided_slice %235 {offsets = [0, 128], sizes = [8, 128], strides = [1, 1]} : vector<8x384xf32> to vector<8x128xf32>
    %246 = arith.addf %244, %245 : vector<8x128xf32>
    %247 = arith.negf %246 : vector<8x128xf32>
    %248 = math.exp %247 : vector<8x128xf32>
    %cst_76 = arith.constant 1.000000e+00 : f32
    %249 = vector.broadcast %cst_76 : f32 to vector<8x128xf32>
    %250 = arith.addf %249, %248 : vector<8x128xf32>
    %251 = arith.divf %249, %250 : vector<8x128xf32>
    %252 = vector.extract_strided_slice %232 {offsets = [0, 256], sizes = [8, 128], strides = [1, 1]} : vector<8x384xf32> to vector<8x128xf32>
    %253 = vector.extract_strided_slice %235 {offsets = [0, 256], sizes = [8, 128], strides = [1, 1]} : vector<8x384xf32> to vector<8x128xf32>
    %254 = vector.broadcast %23 : vector<1x128xf32> to vector<8x128xf32>
    %255 = arith.addf %253, %254 : vector<8x128xf32>
    %256 = arith.mulf %243, %255 : vector<8x128xf32>
    %257 = arith.addf %252, %256 : vector<8x128xf32>
    %258 = math.tanh %257 : vector<8x128xf32>
    %cst_77 = arith.constant 1.000000e+00 : f32
    %259 = vector.broadcast %cst_77 : f32 to vector<8x128xf32>
    %260 = arith.subf %259, %251 : vector<8x128xf32>
    %261 = arith.mulf %260, %258 : vector<8x128xf32>
    %262 = arith.mulf %251, %229 : vector<8x128xf32>
    %263 = arith.addf %261, %262 : vector<8x128xf32>
    %264 = arith.index_cast %c5_i32 : i32 to index
    %c0_78 = arith.constant 0 : index
    %c0_79 = arith.constant 0 : index
    %265 = vector.load %arg13[%264, %c0_78, %c0_79] : memref<8x8x1xf32, #tpu.memory_space<vmem>>, vector<1x8x1xf32>
    %266 = vector.shape_cast %265 : vector<1x8x1xf32> to vector<8x1xf32>
    %267 = arith.subf %263, %229 : vector<8x128xf32>
    %268 = vector.broadcast %266 : vector<8x1xf32> to vector<8x128xf32>
    %269 = arith.mulf %268, %267 : vector<8x128xf32>
    %270 = arith.addf %229, %269 : vector<8x128xf32>
    %c6_i32 = arith.constant 6 : i32
    %271 = arith.index_cast %c6_i32 : i32 to index
    %c0_80 = arith.constant 0 : index
    %c0_81 = arith.constant 0 : index
    %272 = vector.load %arg12[%271, %c0_80, %c0_81] : memref<8x8x384xf32, #tpu.memory_space<vmem>>, vector<1x8x384xf32>
    %273 = vector.shape_cast %272 : vector<1x8x384xf32> to vector<8x384xf32>
    %274 = arith.truncf %270 : vector<8x128xf32> to vector<8x128xbf16>
    %c0_82 = arith.constant 0 : index
    %c0_83 = arith.constant 0 : index
    %275 = vector.load %arg5[%c0_82, %c0_83] : memref<128x384xbf16, #tpu.memory_space<vmem>>, vector<128x384xbf16>
    %cst_84 = arith.constant dense<0.000000e+00> : vector<8x384xf32>
    %276 = tpu.matmul %274, %275, %cst_84 {dimension_numbers = #tpu.dot_dimension_numbers<[1], [0], [0], [1], [0, 0, 1, 1], [], []>} : vector<8x128xbf16>, vector<128x384xbf16>, vector<8x384xf32> -> vector<8x384xf32>
    %277 = vector.extract_strided_slice %273 {offsets = [0, 0], sizes = [8, 128], strides = [1, 1]} : vector<8x384xf32> to vector<8x128xf32>
    %278 = vector.extract_strided_slice %276 {offsets = [0, 0], sizes = [8, 128], strides = [1, 1]} : vector<8x384xf32> to vector<8x128xf32>
    %279 = arith.addf %277, %278 : vector<8x128xf32>
    %280 = arith.negf %279 : vector<8x128xf32>
    %281 = math.exp %280 : vector<8x128xf32>
    %cst_85 = arith.constant 1.000000e+00 : f32
    %282 = vector.broadcast %cst_85 : f32 to vector<8x128xf32>
    %283 = arith.addf %282, %281 : vector<8x128xf32>
    %284 = arith.divf %282, %283 : vector<8x128xf32>
    %285 = vector.extract_strided_slice %273 {offsets = [0, 128], sizes = [8, 128], strides = [1, 1]} : vector<8x384xf32> to vector<8x128xf32>
    %286 = vector.extract_strided_slice %276 {offsets = [0, 128], sizes = [8, 128], strides = [1, 1]} : vector<8x384xf32> to vector<8x128xf32>
    %287 = arith.addf %285, %286 : vector<8x128xf32>
    %288 = arith.negf %287 : vector<8x128xf32>
    %289 = math.exp %288 : vector<8x128xf32>
    %cst_86 = arith.constant 1.000000e+00 : f32
    %290 = vector.broadcast %cst_86 : f32 to vector<8x128xf32>
    %291 = arith.addf %290, %289 : vector<8x128xf32>
    %292 = arith.divf %290, %291 : vector<8x128xf32>
    %293 = vector.extract_strided_slice %273 {offsets = [0, 256], sizes = [8, 128], strides = [1, 1]} : vector<8x384xf32> to vector<8x128xf32>
    %294 = vector.extract_strided_slice %276 {offsets = [0, 256], sizes = [8, 128], strides = [1, 1]} : vector<8x384xf32> to vector<8x128xf32>
    %295 = vector.broadcast %23 : vector<1x128xf32> to vector<8x128xf32>
    %296 = arith.addf %294, %295 : vector<8x128xf32>
    %297 = arith.mulf %284, %296 : vector<8x128xf32>
    %298 = arith.addf %293, %297 : vector<8x128xf32>
    %299 = math.tanh %298 : vector<8x128xf32>
    %cst_87 = arith.constant 1.000000e+00 : f32
    %300 = vector.broadcast %cst_87 : f32 to vector<8x128xf32>
    %301 = arith.subf %300, %292 : vector<8x128xf32>
    %302 = arith.mulf %301, %299 : vector<8x128xf32>
    %303 = arith.mulf %292, %270 : vector<8x128xf32>
    %304 = arith.addf %302, %303 : vector<8x128xf32>
    %305 = arith.index_cast %c6_i32 : i32 to index
    %c0_88 = arith.constant 0 : index
    %c0_89 = arith.constant 0 : index
    %306 = vector.load %arg13[%305, %c0_88, %c0_89] : memref<8x8x1xf32, #tpu.memory_space<vmem>>, vector<1x8x1xf32>
    %307 = vector.shape_cast %306 : vector<1x8x1xf32> to vector<8x1xf32>
    %308 = arith.subf %304, %270 : vector<8x128xf32>
    %309 = vector.broadcast %307 : vector<8x1xf32> to vector<8x128xf32>
    %310 = arith.mulf %309, %308 : vector<8x128xf32>
    %311 = arith.addf %270, %310 : vector<8x128xf32>
    %c7_i32 = arith.constant 7 : i32
    %312 = arith.index_cast %c7_i32 : i32 to index
    %c0_90 = arith.constant 0 : index
    %c0_91 = arith.constant 0 : index
    %313 = vector.load %arg12[%312, %c0_90, %c0_91] : memref<8x8x384xf32, #tpu.memory_space<vmem>>, vector<1x8x384xf32>
    %314 = vector.shape_cast %313 : vector<1x8x384xf32> to vector<8x384xf32>
    %315 = arith.truncf %311 : vector<8x128xf32> to vector<8x128xbf16>
    %c0_92 = arith.constant 0 : index
    %c0_93 = arith.constant 0 : index
    %316 = vector.load %arg5[%c0_92, %c0_93] : memref<128x384xbf16, #tpu.memory_space<vmem>>, vector<128x384xbf16>
    %cst_94 = arith.constant dense<0.000000e+00> : vector<8x384xf32>
    %317 = tpu.matmul %315, %316, %cst_94 {dimension_numbers = #tpu.dot_dimension_numbers<[1], [0], [0], [1], [0, 0, 1, 1], [], []>} : vector<8x128xbf16>, vector<128x384xbf16>, vector<8x384xf32> -> vector<8x384xf32>
    %318 = vector.extract_strided_slice %314 {offsets = [0, 0], sizes = [8, 128], strides = [1, 1]} : vector<8x384xf32> to vector<8x128xf32>
    %319 = vector.extract_strided_slice %317 {offsets = [0, 0], sizes = [8, 128], strides = [1, 1]} : vector<8x384xf32> to vector<8x128xf32>
    %320 = arith.addf %318, %319 : vector<8x128xf32>
    %321 = arith.negf %320 : vector<8x128xf32>
    %322 = math.exp %321 : vector<8x128xf32>
    %cst_95 = arith.constant 1.000000e+00 : f32
    %323 = vector.broadcast %cst_95 : f32 to vector<8x128xf32>
    %324 = arith.addf %323, %322 : vector<8x128xf32>
    %325 = arith.divf %323, %324 : vector<8x128xf32>
    %326 = vector.extract_strided_slice %314 {offsets = [0, 128], sizes = [8, 128], strides = [1, 1]} : vector<8x384xf32> to vector<8x128xf32>
    %327 = vector.extract_strided_slice %317 {offsets = [0, 128], sizes = [8, 128], strides = [1, 1]} : vector<8x384xf32> to vector<8x128xf32>
    %328 = arith.addf %326, %327 : vector<8x128xf32>
    %329 = arith.negf %328 : vector<8x128xf32>
    %330 = math.exp %329 : vector<8x128xf32>
    %cst_96 = arith.constant 1.000000e+00 : f32
    %331 = vector.broadcast %cst_96 : f32 to vector<8x128xf32>
    %332 = arith.addf %331, %330 : vector<8x128xf32>
    %333 = arith.divf %331, %332 : vector<8x128xf32>
    %334 = vector.extract_strided_slice %314 {offsets = [0, 256], sizes = [8, 128], strides = [1, 1]} : vector<8x384xf32> to vector<8x128xf32>
    %335 = vector.extract_strided_slice %317 {offsets = [0, 256], sizes = [8, 128], strides = [1, 1]} : vector<8x384xf32> to vector<8x128xf32>
    %336 = vector.broadcast %23 : vector<1x128xf32> to vector<8x128xf32>
    %337 = arith.addf %335, %336 : vector<8x128xf32>
    %338 = arith.mulf %325, %337 : vector<8x128xf32>
    %339 = arith.addf %334, %338 : vector<8x128xf32>
    %340 = math.tanh %339 : vector<8x128xf32>
    %cst_97 = arith.constant 1.000000e+00 : f32
    %341 = vector.broadcast %cst_97 : f32 to vector<8x128xf32>
    %342 = arith.subf %341, %333 : vector<8x128xf32>
    %343 = arith.mulf %342, %340 : vector<8x128xf32>
    %344 = arith.mulf %333, %311 : vector<8x128xf32>
    %345 = arith.addf %343, %344 : vector<8x128xf32>
    %346 = arith.index_cast %c7_i32 : i32 to index
    %c0_98 = arith.constant 0 : index
    %c0_99 = arith.constant 0 : index
    %347 = vector.load %arg13[%346, %c0_98, %c0_99] : memref<8x8x1xf32, #tpu.memory_space<vmem>>, vector<1x8x1xf32>
    %348 = vector.shape_cast %347 : vector<1x8x1xf32> to vector<8x1xf32>
    %349 = arith.subf %345, %311 : vector<8x128xf32>
    %350 = vector.broadcast %348 : vector<8x1xf32> to vector<8x128xf32>
    %351 = arith.mulf %350, %349 : vector<8x128xf32>
    %352 = arith.addf %311, %351 : vector<8x128xf32>
    %c8_i32_100 = arith.constant 8 : i32
    %c0_101 = arith.constant 0 : index
    %c0_102 = arith.constant 0 : index
    %353 = vector.load %arg11[%c0_101, %c0_102] : memref<8x128xf32, #tpu.memory_space<vmem>>, vector<8x128xf32>
    tpu.vector_store %arg11[%c0_101, %c0_102], %352 {strides = array<i32>} : memref<8x128xf32, #tpu.memory_space<vmem>>, vector<8x128xf32>,
    %c0_i32_103 = arith.constant 0 : i32
    %354 = arith.cmpi eq, %arg1, %c0_i32_103 : i32
    %355 = arith.extui %354 : i1 to i32
    %c0_i32_104 = arith.constant 0 : i32
    %356 = arith.cmpi ne, %355, %c0_i32_104 : i32
    scf.if %356 {
      %c0_105 = arith.constant 0 : index
      %c0_106 = arith.constant 0 : index
      %357 = vector.load %arg11[%c0_105, %c0_106] : memref<8x128xf32, #tpu.memory_space<vmem>>, vector<8x128xf32>
      %c0_107 = arith.constant 0 : index
      %c0_108 = arith.constant 0 : index
      %358 = vector.load %arg8[%c0_107, %c0_108] : memref<128x1xf32, #tpu.memory_space<vmem>>, vector<128x1xf32>
      %cst_109 = arith.constant dense<0.000000e+00> : vector<8x1xf32>
      %359 = tpu.matmul %357, %358, %cst_109 {dimension_numbers = #tpu.dot_dimension_numbers<[1], [0], [0], [1], [0, 0, 1, 1], [], []>} : vector<8x128xf32>, vector<128x1xf32>, vector<8x1xf32> -> vector<8x1xf32>
      %c0_110 = arith.constant 0 : index
      %c0_111 = arith.constant 0 : index
      %360 = vector.load %arg9[%c0_110, %c0_111] : memref<1x1xf32, #tpu.memory_space<vmem>>, vector<1x1xf32>
      %361 = vector.broadcast %360 : vector<1x1xf32> to vector<8x1xf32>
      %362 = arith.addf %359, %361 : vector<8x1xf32>
      %363 = arith.negf %362 : vector<8x1xf32>
      %364 = math.exp %363 : vector<8x1xf32>
      %cst_112 = arith.constant 1.000000e+00 : f32
      %365 = vector.broadcast %cst_112 : f32 to vector<8x1xf32>
      %366 = arith.addf %365, %364 : vector<8x1xf32>
      %367 = arith.divf %365, %366 : vector<8x1xf32>
      %c0_113 = arith.constant 0 : index
      %c0_114 = arith.constant 0 : index
      %368 = vector.load %arg10[%c0_113, %c0_114] : memref<8x1xf32, #tpu.memory_space<vmem>>, vector<8x1xf32>
      tpu.vector_store %arg10[%c0_113, %c0_114], %367 {strides = array<i32>} : memref<8x1xf32, #tpu.memory_space<vmem>>, vector<8x1xf32>,
    } else {
    }
    return
  }
  func.func @transform_0(%arg0: i32, %arg1: i32) -> (i32, i32, i32) {
    %c0_i32 = arith.constant 0 : i32
    %c0_i32_0 = arith.constant 0 : i32
    return %arg1, %arg0, %c0_i32 : i32, i32, i32
  }
  func.func @transform_1(%arg0: i32, %arg1: i32) -> (i32, i32) {
    %c0_i32 = arith.constant 0 : i32
    %c0_i32_0 = arith.constant 0 : i32
    return %arg0, %c0_i32 : i32, i32
  }
  func.func @transform_2(%arg0: i32, %arg1: i32) -> (i32, i32) {
    %c0_i32 = arith.constant 0 : i32
    %c0_i32_0 = arith.constant 0 : i32
    %c0_i32_1 = arith.constant 0 : i32
    return %c0_i32, %c0_i32_0 : i32, i32
  }
  func.func @transform_3(%arg0: i32, %arg1: i32) -> (i32, i32) {
    %c0_i32 = arith.constant 0 : i32
    %c0_i32_0 = arith.constant 0 : i32
    %c0_i32_1 = arith.constant 0 : i32
    return %c0_i32, %c0_i32_0 : i32, i32
  }
  func.func @transform_4(%arg0: i32, %arg1: i32) -> (i32, i32) {
    %c0_i32 = arith.constant 0 : i32
    %c0_i32_0 = arith.constant 0 : i32
    %c0_i32_1 = arith.constant 0 : i32
    return %c0_i32, %c0_i32_0 : i32, i32
  }
  func.func @transform_5(%arg0: i32, %arg1: i32) -> (i32, i32) {
    %c0_i32 = arith.constant 0 : i32
    %c0_i32_0 = arith.constant 0 : i32
    %c0_i32_1 = arith.constant 0 : i32
    return %c0_i32, %c0_i32_0 : i32, i32
  }
  func.func @transform_6(%arg0: i32, %arg1: i32) -> (i32, i32) {
    %c0_i32 = arith.constant 0 : i32
    %c0_i32_0 = arith.constant 0 : i32
    %c0_i32_1 = arith.constant 0 : i32
    return %c0_i32, %c0_i32_0 : i32, i32
  }
  func.func @transform_7(%arg0: i32, %arg1: i32) -> (i32, i32) {
    %c0_i32 = arith.constant 0 : i32
    %c0_i32_0 = arith.constant 0 : i32
    %c0_i32_1 = arith.constant 0 : i32
    return %c0_i32, %c0_i32_0 : i32, i32
  }
  func.func @transform_8(%arg0: i32, %arg1: i32) -> (i32, i32) {
    %c0_i32 = arith.constant 0 : i32
    %c0_i32_0 = arith.constant 0 : i32
    return %arg0, %c0_i32 : i32, i32
  }
}

</mosaic_0001>

<llo_original>
// kernel: tpu_custom_call.1
$region0: #{tpu_custom_call.1}
  #allocation0 [shape = 'u32[]', space=smem, size = 0x4, offset = 0x4, fixed_abs, tag = 'smem constant byte address 0x4 - core index']
  #allocation1 [shape = 'u32[72,128]{1,0:T(1,128)}', space=vmem, size = 0x9000, scoped, tag = 'internal scratch']
  #allocation2 [shape = 'f32[8,128]{1,0:T(8,128)}', space=vmem, size = 0x1000, scoped, tag = 'scratch operand']
  #allocation3 [shape = 'f32[8,8,384]{2,1,0:T(8,128)}', space=vmem, size = 0x18000, scoped, tag = 'scratch operand']
  #allocation4 [shape = 'f32[8,8,1]{2,1,0:T(8,128)}', space=vmem, size = 0x8000, scoped, tag = 'scratch operand']
  #allocation5 [shape = 'f32[1,1]{1,0:T(1,128)S(1)}', space=vmem, size = 0x200, scoped, tag = 'scoped memory for tpu_custom_call.1']
  %s0 = inlined_call_operand.vmem [shape: bf16[8,8,128], index: 0, kind: input, shape index: {}]
  %s1 = inlined_call_operand.vmem [shape: s32[8,1], index: 1, kind: input, shape index: {}]
  %s2 = inlined_call_operand.hbm [shape: bf16[128,384], index: 2, kind: input, shape index: {}]
  %s3 = inlined_call_operand.hbm [shape: bf16[128,384], index: 3, kind: input, shape index: {}]
  %s4 = inlined_call_operand.vmem [shape: f32[1,384], index: 4, kind: input, shape index: {}]
  %s5 = inlined_call_operand.vmem [shape: f32[1,128], index: 5, kind: input, shape index: {}]
  %s6 = inlined_call_operand.vmem [shape: f32[128,1], index: 6, kind: input, shape index: {}]
  %s7 = inlined_call_operand.<no memory space> [shape: f32[1,1], index: 7, kind: input, shape index: {}]
  %s8 = inlined_call_operand.vmem [shape: f32[8,1], index: 8, kind: output, shape index: {}]
  %s9 = sld [smem:[#allocation0]]
  $region58: #{tpu_custom_call.1} parent=0
    _
  %s11 = ssub.s32 1, %s9
  %s12 = scalar_select 0, %s11, %s9
  %v13 = vstv %s7
  %14 = vst [vmem:[#allocation5] sm:$0x1] %v13
  $region1: #{tpu_custom_call.1} parent=0
    #allocation6 [shape = 'u8[98304]{0}', space=vmem, size = 0x18000, scoped, tag = 'input window, operand 2, single buffered']
    #allocation7 [shape = 's32[1]{0}', space=sflag, size = 0x4, scoped, tag = 'scoped memory for tpu_custom_call.1']
    #allocation8 [shape = 'u8[98304]{0}', space=vmem, size = 0x18000, scoped, tag = 'input window, operand 3, single buffered']
    #allocation9 [shape = 's32[1]{0}', space=sflag, size = 0x4, scoped, tag = 'scoped memory for tpu_custom_call.1']
    %15 = vsyncpa [#allocation7], 0
    %16 = vsyncpa [#allocation9], 0
    // Predicated region
    $region2: #{tpu_custom_call.1} parent=1 // pred_check
      _
    $region3: #{tpu_custom_call.1} parent=1 // pred_check_branch
      %18 = sbr.rel (0) target = $region5
    $region4: #{tpu_custom_call.1} parent=1 // pred_region
      _
    $region5: #{tpu_custom_call.1} parent=1 // pred_fallthru
      _
    // Predicated region
    $region6: #{tpu_custom_call.1} parent=1 // pred_check
      _
    $region7: #{tpu_custom_call.1} parent=1 // pred_check_branch
      %20 = sbr.rel (0) target = $region9
    $region8: #{tpu_custom_call.1} parent=1 // pred_region
      _
    $region9: #{tpu_custom_call.1} parent=1 // pred_fallthru
      _
    // Predicated region
    $region10: #{tpu_custom_call.1} parent=1 // pred_check
      _
    $region11: #{tpu_custom_call.1} parent=1 // pred_check_branch
      %22 = sbr.rel (0) target = $region13
    $region12: #{tpu_custom_call.1} parent=1 // pred_region
      %24 = vsyncadd [#allocation7], 0
      %s25 = sshll.u32 %s2, 4
      %s26 = int_to_ptr.hbm [resolvable:$true] %s25
      %s27 = sshll.u32 [#allocation6], 4
      %s28 = int_to_ptr.vmem [resolvable:$true] %s27
      %33 = dma.hbm_to_vmem [thread:$0]  %s26, 3072, %s28, [#allocation7], 192, 192, 12
    $region13: #{tpu_custom_call.1} parent=1 // pred_fallthru
      _
    // Predicated region
    $region14: #{tpu_custom_call.1} parent=1 // pred_check
      _
    $region15: #{tpu_custom_call.1} parent=1 // pred_check_branch
      %35 = sbr.rel (0) target = $region17
    $region16: #{tpu_custom_call.1} parent=1 // pred_region
      %37 = vsyncadd [#allocation9], 0
      %s38 = sshll.u32 %s3, 4
      %s39 = int_to_ptr.hbm [resolvable:$true] %s38
      %s40 = sshll.u32 [#allocation8], 4
      %s41 = int_to_ptr.vmem [resolvable:$true] %s40
      %46 = dma.hbm_to_vmem [thread:$0]  %s39, 3072, %s41, [#allocation9], 192, 192, 12
    $region17: #{tpu_custom_call.1} parent=1 // pred_fallthru
      _
    // Predicated region
    $region18: #{tpu_custom_call.1} parent=1 // pred_check
      _
    $region19: #{tpu_custom_call.1} parent=1 // pred_check_branch
      %48 = sbr.rel (0) target = $region21
    $region20: #{tpu_custom_call.1} parent=1 // pred_region
      _
    $region21: #{tpu_custom_call.1} parent=1 // pred_fallthru
      _
    // Predicated region
    $region22: #{tpu_custom_call.1} parent=1 // pred_check
      _
    $region23: #{tpu_custom_call.1} parent=1 // pred_check_branch
      %50 = sbr.rel (0) target = $region25
    $region24: #{tpu_custom_call.1} parent=1 // pred_region
      _
    $region25: #{tpu_custom_call.1} parent=1 // pred_fallthru
      _
    // Predicated region
    $region26: #{tpu_custom_call.1} parent=1 // pred_check
      _
    $region27: #{tpu_custom_call.1} parent=1 // pred_check_branch
      %52 = sbr.rel (0) target = $region29
    $region28: #{tpu_custom_call.1} parent=1 // pred_region
      _
    $region29: #{tpu_custom_call.1} parent=1 // pred_fallthru
      _
    // Predicated region
    $region30: #{tpu_custom_call.1} parent=1 // pred_check
      _
    $region31: #{tpu_custom_call.1} parent=1 // pred_check_branch
      %54 = sbr.rel (0) target = $region33
    $region32: #{tpu_custom_call.1} parent=1 // pred_region
      _
    $region33: #{tpu_custom_call.1} parent=1 // pred_fallthru
      _
    // Predicated region
    $region34: #{tpu_custom_call.1} parent=1 // pred_check
      _
    $region35: #{tpu_custom_call.1} parent=1 // pred_check_branch
      %56 = sbr.rel (0) target = $region37
    $region36: #{tpu_custom_call.1} parent=1 // pred_region
      %58 = dma.done [#allocation7], 3072
    $region37: #{tpu_custom_call.1} parent=1 // pred_fallthru
      _
    // Predicated region
    $region38: #{tpu_custom_call.1} parent=1 // pred_check
      _
    $region39: #{tpu_custom_call.1} parent=1 // pred_check_branch
      %60 = sbr.rel (0) target = $region41
    $region40: #{tpu_custom_call.1} parent=1 // pred_region
      %62 = dma.done [#allocation9], 3072
    $region41: #{tpu_custom_call.1} parent=1 // pred_fallthru
      _
    %p63 = scmp.eq.s32.totalorder 0, 0
    // Predicated region
    $region42: #{tpu_custom_call.1} parent=1 // pred_check
      %p64 = pneg %p63
    $region43: #{tpu_custom_call.1} parent=1 // pred_check_branch
      %66 = sbr.rel (%p64) target = $region45
    $region44: #{tpu_custom_call.1} parent=1 // pred_region
      %67 = vst [vmem:[#allocation2] sm:$0xff] 0.0
    $region45: #{tpu_custom_call.1} parent=1 // pred_fallthru
      _
    %v68 = vld [vmem:[%s0] sm:$0xf]
    %v69 = vld [vmem:[%s0 + $0x4] sm:$0xf]
    %v70 = vld [vmem:[%s0 + $0x8] sm:$0xf]
    %v71 = vld [vmem:[%s0 + $0xc] sm:$0xf]
    %v72 = vld [vmem:[%s0 + $0x10] sm:$0xf]
    %v73 = vld [vmem:[%s0 + $0x14] sm:$0xf]
    %v74 = vld [vmem:[%s0 + $0x18] sm:$0xf]
    %v75 = vld [vmem:[%s0 + $0x1c] sm:$0xf]
    %v76 = vld [vmem:[#allocation6] sm:$0xff]
    %v77 = vld [vmem:[#allocation6 + $0x8] sm:$0xf]
    %v78 = vld [vmem:[#allocation6 + $0xc] sm:$0xff]
    %v79 = vld [vmem:[#allocation6 + $0x14] sm:$0xf]
    %v80 = vld [vmem:[#allocation6 + $0x18] sm:$0xff]
    %v81 = vld [vmem:[#allocation6 + $0x20] sm:$0xf]
    %v82 = vld [vmem:[#allocation6 + $0x24] sm:$0xff]
    %v83 = vld [vmem:[#allocation6 + $0x2c] sm:$0xf]
    %v84 = vld [vmem:[#allocation6 + $0x30] sm:$0xff]
    %v85 = vld [vmem:[#allocation6 + $0x38] sm:$0xf]
    %v86 = vld [vmem:[#allocation6 + $0x3c] sm:$0xff]
    %v87 = vld [vmem:[#allocation6 + $0x44] sm:$0xf]
    %v88 = vld [vmem:[#allocation6 + $0x48] sm:$0xff]
    %v89 = vld [vmem:[#allocation6 + $0x50] sm:$0xf]
    %v90 = vld [vmem:[#allocation6 + $0x54] sm:$0xff]
    %v91 = vld [vmem:[#allocation6 + $0x5c] sm:$0xf]
    %v92 = vld [vmem:[#allocation6 + $0x60] sm:$0xff]
    %v93 = vld [vmem:[#allocation6 + $0x68] sm:$0xf]
    %v94 = vld [vmem:[#allocation6 + $0x6c] sm:$0xff]
    %v95 = vld [vmem:[#allocation6 + $0x74] sm:$0xf]
    %v96 = vld [vmem:[#allocation6 + $0x78] sm:$0xff]
    %v97 = vld [vmem:[#allocation6 + $0x80] sm:$0xf]
    %v98 = vld [vmem:[#allocation6 + $0x84] sm:$0xff]
    %v99 = vld [vmem:[#allocation6 + $0x8c] sm:$0xf]
    %v100 = vld [vmem:[#allocation6 + $0x90] sm:$0xff]
    %v101 = vld [vmem:[#allocation6 + $0x98] sm:$0xf]
    %v102 = vld [vmem:[#allocation6 + $0x9c] sm:$0xff]
    %v103 = vld [vmem:[#allocation6 + $0xa4] sm:$0xf]
    %v104 = vld [vmem:[#allocation6 + $0xa8] sm:$0xff]
    %v105 = vld [vmem:[#allocation6 + $0xb0] sm:$0xf]
    %v106 = vld [vmem:[#allocation6 + $0xb4] sm:$0xff]
    %v107 = vld [vmem:[#allocation6 + $0xbc] sm:$0xf]
    %v108 = vld [vmem:[%s4] sm:$0x7]
    %v110 = vperm.slane %v108, 0
    %v111 = vperm.slane %v108, 1
    %v112 = vperm.slane %v108, 2
    %v124 = vunpack.c.l.b16 %v68
    %v125 = vunpack.c.l.b16 %v69
    %v126 = vunpack.c.l.b16 %v70
    %v127 = vunpack.c.l.b16 %v71
    %v128 = vunpack.c.l.b16 %v72
    %v129 = vunpack.c.l.b16 %v73
    %v130 = vunpack.c.l.b16 %v74
    %v131 = vunpack.c.l.b16 %v75
    %v132 = vpack.c.b16 %v125, %v124
    %v133 = vpack.c.b16 %v127, %v126
    %v134 = vpack.c.b16 %v129, %v128
    %v135 = vpack.c.b16 %v131, %v130
    %v172 = vunpack.c.l.b16 %v76
    %v173 = vunpack.c.h.b16 %v76
    %v174 = vunpack.c.l.b16 %v77
    %v175 = vunpack.c.l.b16 %v78
    %v176 = vunpack.c.h.b16 %v78
    %v177 = vunpack.c.l.b16 %v79
    %v178 = vunpack.c.l.b16 %v80
    %v179 = vunpack.c.h.b16 %v80
    %v180 = vunpack.c.l.b16 %v81
    %v181 = vunpack.c.l.b16 %v82
    %v182 = vunpack.c.h.b16 %v82
    %v183 = vunpack.c.l.b16 %v83
    %v184 = vunpack.c.l.b16 %v84
    %v185 = vunpack.c.h.b16 %v84
    %v186 = vunpack.c.l.b16 %v85
    %v187 = vunpack.c.l.b16 %v86
    %v188 = vunpack.c.h.b16 %v86
    %v189 = vunpack.c.l.b16 %v87
    %v190 = vunpack.c.l.b16 %v88
    %v191 = vunpack.c.h.b16 %v88
    %v192 = vunpack.c.l.b16 %v89
    %v193 = vunpack.c.l.b16 %v90
    %v194 = vunpack.c.h.b16 %v90
    %v195 = vunpack.c.l.b16 %v91
    %v196 = vunpack.c.l.b16 %v92
    %v197 = vunpack.c.h.b16 %v92
    %v198 = vunpack.c.l.b16 %v93
    %v199 = vunpack.c.l.b16 %v94
    %v200 = vunpack.c.h.b16 %v94
    %v201 = vunpack.c.l.b16 %v95
    %v202 = vunpack.c.l.b16 %v96
    %v203 = vunpack.c.h.b16 %v96
    %v204 = vunpack.c.l.b16 %v97
    %v205 = vunpack.c.l.b16 %v98
    %v206 = vunpack.c.h.b16 %v98
    %v207 = vunpack.c.l.b16 %v99
    %v208 = vunpack.c.l.b16 %v100
    %v209 = vunpack.c.h.b16 %v100
    %v210 = vunpack.c.l.b16 %v101
    %v211 = vunpack.c.l.b16 %v102
    %v212 = vunpack.c.h.b16 %v102
    %v213 = vunpack.c.l.b16 %v103
    %v214 = vunpack.c.l.b16 %v104
    %v215 = vunpack.c.h.b16 %v104
    %v216 = vunpack.c.l.b16 %v105
    %v217 = vunpack.c.l.b16 %v106
    %v218 = vunpack.c.h.b16 %v106
    %v219 = vunpack.c.l.b16 %v107
    %v220 = vpack.c.b16 %v175, %v172
    %v221 = vpack.c.b16 %v176, %v173
    %v222 = vpack.c.b16 %v177, %v174
    %v223 = vpack.c.b16 %v181, %v178
    %v224 = vpack.c.b16 %v182, %v179
    %v225 = vpack.c.b16 %v183, %v180
    %v226 = vpack.c.b16 %v187, %v184
    %v227 = vpack.c.b16 %v188, %v185
    %v228 = vpack.c.b16 %v189, %v186
    %v229 = vpack.c.b16 %v193, %v190
    %v230 = vpack.c.b16 %v194, %v191
    %v231 = vpack.c.b16 %v195, %v192
    %v232 = vpack.c.b16 %v199, %v196
    %v233 = vpack.c.b16 %v200, %v197
    %v234 = vpack.c.b16 %v201, %v198
    %v235 = vpack.c.b16 %v205, %v202
    %v236 = vpack.c.b16 %v206, %v203
    %v237 = vpack.c.b16 %v207, %v204
    %v238 = vpack.c.b16 %v211, %v208
    %v239 = vpack.c.b16 %v212, %v209
    %v240 = vpack.c.b16 %v213, %v210
    %v241 = vpack.c.b16 %v217, %v214
    %v242 = vpack.c.b16 %v218, %v215
    %v243 = vpack.c.b16 %v219, %v216
    %268 = vmatpush.bf16.msra.mxu0 %v241
    %269 = vmatpush.bf16.msra.mxu0 %v238
    %270 = vmatpush.bf16.msra.mxu0 %v235
    %271 = vmatpush.bf16.msra.mxu0 %v232
    %272 = vmatpush.bf16.msra.mxu0 %v229
    %273 = vmatpush.bf16.msra.mxu0 %v226
    %274 = vmatpush.bf16.msra.mxu0 %v223
    %275 = vmatpush.bf16.msra.mxu0 %v220
    %276 = vmatmul.bf16.gmra.mxu0 %v132
    %v277 = vpop.f32.mrf.mxu0
    %v278 = vadd.f32 %v110, %v277
    %v279 = vpop.f32.mrf.mxu0
    %v280 = vadd.f32 %v110, %v279
    %281 = vmatmul.bf16.gmra.mxu0 %v133
    %v282 = vpop.f32.mrf.mxu0
    %v283 = vadd.f32 %v110, %v282
    %v284 = vpop.f32.mrf.mxu0
    %v285 = vadd.f32 %v110, %v284
    %286 = vmatmul.bf16.gmra.mxu0 %v134
    %v287 = vpop.f32.mrf.mxu0
    %v288 = vadd.f32 %v110, %v287
    %v289 = vpop.f32.mrf.mxu0
    %v290 = vadd.f32 %v110, %v289
    %291 = vmatmul.bf16.gmra.mxu0 %v135
    %v292 = vpop.f32.mrf.mxu0
    %v293 = vadd.f32 %v110, %v292
    %v294 = vpop.f32.mrf.mxu0
    %v295 = vadd.f32 %v110, %v294
    %296 = vdwg.mxu0
    %297 = vmatpush.bf16.msra.mxu0 %v242
    %298 = vmatpush.bf16.msra.mxu0 %v239
    %299 = vmatpush.bf16.msra.mxu0 %v236
    %300 = vmatpush.bf16.msra.mxu0 %v233
    %301 = vmatpush.bf16.msra.mxu0 %v230
    %302 = vmatpush.bf16.msra.mxu0 %v227
    %303 = vmatpush.bf16.msra.mxu0 %v224
    %304 = vmatpush.bf16.msra.mxu0 %v221
    %305 = vmatmul.bf16.gmra.mxu0 %v132
    %v306 = vpop.f32.mrf.mxu0
    %v307 = vadd.f32 %v111, %v306
    %v308 = vpop.f32.mrf.mxu0
    %v309 = vadd.f32 %v111, %v308
    %310 = vmatmul.bf16.gmra.mxu0 %v133
    %v311 = vpop.f32.mrf.mxu0
    %v312 = vadd.f32 %v111, %v311
    %v313 = vpop.f32.mrf.mxu0
    %v314 = vadd.f32 %v111, %v313
    %315 = vmatmul.bf16.gmra.mxu0 %v134
    %v316 = vpop.f32.mrf.mxu0
    %v317 = vadd.f32 %v111, %v316
    %v318 = vpop.f32.mrf.mxu0
    %v319 = vadd.f32 %v111, %v318
    %320 = vmatmul.bf16.gmra.mxu0 %v135
    %v321 = vpop.f32.mrf.mxu0
    %v322 = vadd.f32 %v111, %v321
    %v323 = vpop.f32.mrf.mxu0
    %v324 = vadd.f32 %v111, %v323
    %325 = vdwg.mxu0
    %326 = vmatpush.bf16.msra.mxu0 %v243
    %327 = vmatpush.bf16.msra.mxu0 %v240
    %328 = vmatpush.bf16.msra.mxu0 %v237
    %329 = vmatpush.bf16.msra.mxu0 %v234
    %330 = vmatpush.bf16.msra.mxu0 %v231
    %331 = vmatpush.bf16.msra.mxu0 %v228
    %332 = vmatpush.bf16.msra.mxu0 %v225
    %333 = vmatpush.bf16.msra.mxu0 %v222
    %334 = vmatmul.bf16.gmra.mxu0 %v132
    %v335 = vpop.f32.mrf.mxu0
    %v336 = vadd.f32 %v112, %v335
    %v337 = vpop.f32.mrf.mxu0
    %v338 = vadd.f32 %v112, %v337
    %339 = vmatmul.bf16.gmra.mxu0 %v133
    %v340 = vpop.f32.mrf.mxu0
    %v341 = vadd.f32 %v112, %v340
    %v342 = vpop.f32.mrf.mxu0
    %v343 = vadd.f32 %v112, %v342
    %344 = vmatmul.bf16.gmra.mxu0 %v134
    %v345 = vpop.f32.mrf.mxu0
    %v346 = vadd.f32 %v112, %v345
    %v347 = vpop.f32.mrf.mxu0
    %v348 = vadd.f32 %v112, %v347
    %349 = vmatmul.bf16.gmra.mxu0 %v135
    %v350 = vpop.f32.mrf.mxu0
    %v351 = vadd.f32 %v112, %v350
    %v352 = vpop.f32.mrf.mxu0
    %v353 = vadd.f32 %v112, %v352
    %354 = vdwg.mxu0
    %355 = vst [vmem:[#allocation3] sm:$0xff] %v278
    %356 = vst [vmem:[#allocation3 + $0x8] sm:$0xff] %v307
    %357 = vst [vmem:[#allocation3 + $0x10] sm:$0xff] %v336
    %358 = vst [vmem:[#allocation3 + $0x18] sm:$0xff] %v280
    %359 = vst [vmem:[#allocation3 + $0x20] sm:$0xff] %v309
    %360 = vst [vmem:[#allocation3 + $0x28] sm:$0xff] %v338
    %361 = vst [vmem:[#allocation3 + $0x30] sm:$0xff] %v283
    %362 = vst [vmem:[#allocation3 + $0x38] sm:$0xff] %v312
    %363 = vst [vmem:[#allocation3 + $0x40] sm:$0xff] %v341
    %364 = vst [vmem:[#allocation3 + $0x48] sm:$0xff] %v285
    %365 = vst [vmem:[#allocation3 + $0x50] sm:$0xff] %v314
    %366 = vst [vmem:[#allocation3 + $0x58] sm:$0xff] %v343
    %367 = vst [vmem:[#allocation3 + $0x60] sm:$0xff] %v288
    %368 = vst [vmem:[#allocation3 + $0x68] sm:$0xff] %v317
    %369 = vst [vmem:[#allocation3 + $0x70] sm:$0xff] %v346
    %370 = vst [vmem:[#allocation3 + $0x78] sm:$0xff] %v290
    %371 = vst [vmem:[#allocation3 + $0x80] sm:$0xff] %v319
    %372 = vst [vmem:[#allocation3 + $0x88] sm:$0xff] %v348
    %373 = vst [vmem:[#allocation3 + $0x90] sm:$0xff] %v293
    %374 = vst [vmem:[#allocation3 + $0x98] sm:$0xff] %v322
    %375 = vst [vmem:[#allocation3 + $0xa0] sm:$0xff] %v351
    %376 = vst [vmem:[#allocation3 + $0xa8] sm:$0xff] %v295
    %377 = vst [vmem:[#allocation3 + $0xb0] sm:$0xff] %v324
    %378 = vst [vmem:[#allocation3 + $0xb8] sm:$0xff] %v353
    %s379 = smul.u32 0, 8
    %v380 = vstv %s379
    %v381 = vadd.s32 %v380, 1
    %v382 = vadd.s32 %v380, 2
    %v383 = vadd.s32 %v380, 3
    %v384 = vadd.s32 %v380, 4
    %v385 = vadd.s32 %v380, 5
    %v386 = vadd.s32 %v380, 6
    %v387 = vadd.s32 %v380, 7
    %v388 = vld [vmem:[%s1] sm:$0xff]
    %vm389 = vcmp.lt.s32.totalorder %v380, %v388
    %vm390 = vcmp.lt.s32.totalorder %v381, %v388
    %vm391 = vcmp.lt.s32.totalorder %v382, %v388
    %vm392 = vcmp.lt.s32.totalorder %v383, %v388
    %vm393 = vcmp.lt.s32.totalorder %v384, %v388
    %vm394 = vcmp.lt.s32.totalorder %v385, %v388
    %vm395 = vcmp.lt.s32.totalorder %v386, %v388
    %vm396 = vcmp.lt.s32.totalorder %v387, %v388
    %v397 = vsel %vm389, 1, 0
    %v398 = vsel %vm390, 1, 0
    %v399 = vsel %vm391, 1, 0
    %v400 = vsel %vm392, 1, 0
    %v401 = vsel %vm393, 1, 0
    %v402 = vsel %vm394, 1, 0
    %v403 = vsel %vm395, 1, 0
    %v404 = vsel %vm396, 1, 0
    %v405 = vcvt.s32.f32 %v397
    %v406 = vcvt.s32.f32 %v398
    %v407 = vcvt.s32.f32 %v399
    %v408 = vcvt.s32.f32 %v400
    %v409 = vcvt.s32.f32 %v401
    %v410 = vcvt.s32.f32 %v402
    %v411 = vcvt.s32.f32 %v403
    %v412 = vcvt.s32.f32 %v404
    %vm413 = vcmask 7168
    %414 = vst.msk [vmem:[#allocation4] sm:$0xff] %vm413, %v405
    %415 = vst.msk [vmem:[#allocation4 + $0x8] sm:$0xff] %vm413, %v406
    %416 = vst.msk [vmem:[#allocation4 + $0x10] sm:$0xff] %vm413, %v407
    %417 = vst.msk [vmem:[#allocation4 + $0x18] sm:$0xff] %vm413, %v408
    %418 = vst.msk [vmem:[#allocation4 + $0x20] sm:$0xff] %vm413, %v409
    %419 = vst.msk [vmem:[#allocation4 + $0x28] sm:$0xff] %vm413, %v410
    %420 = vst.msk [vmem:[#allocation4 + $0x30] sm:$0xff] %vm413, %v411
    %421 = vst.msk [vmem:[#allocation4 + $0x38] sm:$0xff] %vm413, %v412
    %v422 = vld [vmem:[%s5] sm:$0x1]
    %v423 = vld [vmem:[#allocation2] sm:$0xff]
    %v424 = vld [vmem:[#allocation3] sm:$0xff]
    %v425 = vld [vmem:[#allocation3 + $0x8] sm:$0xff]
    %v426 = vld [vmem:[#allocation3 + $0x10] sm:$0xff]
    %v427 = vpack.c.bf16 %v423, %v423
    %v428 = vld [vmem:[#allocation8] sm:$0xff]
    %v429 = vld [vmem:[#allocation8 + $0x8] sm:$0xf]
    %v430 = vld [vmem:[#allocation8 + $0xc] sm:$0xff]
    %v431 = vld [vmem:[#allocation8 + $0x14] sm:$0xf]
    %v432 = vld [vmem:[#allocation8 + $0x18] sm:$0xff]
    %v433 = vld [vmem:[#allocation8 + $0x20] sm:$0xf]
    %v434 = vld [vmem:[#allocation8 + $0x24] sm:$0xff]
    %v435 = vld [vmem:[#allocation8 + $0x2c] sm:$0xf]
    %v436 = vld [vmem:[#allocation8 + $0x30] sm:$0xff]
    %v437 = vld [vmem:[#allocation8 + $0x38] sm:$0xf]
    %v438 = vld [vmem:[#allocation8 + $0x3c] sm:$0xff]
    %v439 = vld [vmem:[#allocation8 + $0x44] sm:$0xf]
    %v440 = vld [vmem:[#allocation8 + $0x48] sm:$0xff]
    %v441 = vld [vmem:[#allocation8 + $0x50] sm:$0xf]
    %v442 = vld [vmem:[#allocation8 + $0x54] sm:$0xff]
    %v443 = vld [vmem:[#allocation8 + $0x5c] sm:$0xf]
    %v444 = vld [vmem:[#allocation8 + $0x60] sm:$0xff]
    %v445 = vld [vmem:[#allocation8 + $0x68] sm:$0xf]
    %v446 = vld [vmem:[#allocation8 + $0x6c] sm:$0xff]
    %v447 = vld [vmem:[#allocation8 + $0x74] sm:$0xf]
    %v448 = vld [vmem:[#allocation8 + $0x78] sm:$0xff]
    %v449 = vld [vmem:[#allocation8 + $0x80] sm:$0xf]
    %v450 = vld [vmem:[#allocation8 + $0x84] sm:$0xff]
    %v451 = vld [vmem:[#allocation8 + $0x8c] sm:$0xf]
    %v452 = vld [vmem:[#allocation8 + $0x90] sm:$0xff]
    %v453 = vld [vmem:[#allocation8 + $0x98] sm:$0xf]
    %v454 = vld [vmem:[#allocation8 + $0x9c] sm:$0xff]
    %v455 = vld [vmem:[#allocation8 + $0xa4] sm:$0xf]
    %v456 = vld [vmem:[#allocation8 + $0xa8] sm:$0xff]
    %v457 = vld [vmem:[#allocation8 + $0xb0] sm:$0xf]
    %v458 = vld [vmem:[#allocation8 + $0xb4] sm:$0xff]
    %v459 = vld [vmem:[#allocation8 + $0xbc] sm:$0xf]
    %v492 = vunpack.c.l.b16 %v428
    %v493 = vunpack.c.h.b16 %v428
    %v494 = vunpack.c.l.b16 %v429
    %v495 = vunpack.c.l.b16 %v430
    %v496 = vunpack.c.h.b16 %v430
    %v497 = vunpack.c.l.b16 %v431
    %v498 = vunpack.c.l.b16 %v432
    %v499 = vunpack.c.h.b16 %v432
    %v500 = vunpack.c.l.b16 %v433
    %v501 = vunpack.c.l.b16 %v434
    %v502 = vunpack.c.h.b16 %v434
    %v503 = vunpack.c.l.b16 %v435
    %v504 = vunpack.c.l.b16 %v436
    %v505 = vunpack.c.h.b16 %v436
    %v506 = vunpack.c.l.b16 %v437
    %v507 = vunpack.c.l.b16 %v438
    %v508 = vunpack.c.h.b16 %v438
    %v509 = vunpack.c.l.b16 %v439
    %v510 = vunpack.c.l.b16 %v440
    %v511 = vunpack.c.h.b16 %v440
    %v512 = vunpack.c.l.b16 %v441
    %v513 = vunpack.c.l.b16 %v442
    %v514 = vunpack.c.h.b16 %v442
    %v515 = vunpack.c.l.b16 %v443
    %v516 = vunpack.c.l.b16 %v444
    %v517 = vunpack.c.h.b16 %v444
    %v518 = vunpack.c.l.b16 %v445
    %v519 = vunpack.c.l.b16 %v446
    %v520 = vunpack.c.h.b16 %v446
    %v521 = vunpack.c.l.b16 %v447
    %v522 = vunpack.c.l.b16 %v448
    %v523 = vunpack.c.h.b16 %v448
    %v524 = vunpack.c.l.b16 %v449
    %v525 = vunpack.c.l.b16 %v450
    %v526 = vunpack.c.h.b16 %v450
    %v527 = vunpack.c.l.b16 %v451
    %v528 = vunpack.c.l.b16 %v452
    %v529 = vunpack.c.h.b16 %v452
    %v530 = vunpack.c.l.b16 %v453
    %v531 = vunpack.c.l.b16 %v454
    %v532 = vunpack.c.h.b16 %v454
    %v533 = vunpack.c.l.b16 %v455
    %v534 = vunpack.c.l.b16 %v456
    %v535 = vunpack.c.h.b16 %v456
    %v536 = vunpack.c.l.b16 %v457
    %v537 = vunpack.c.l.b16 %v458
    %v538 = vunpack.c.h.b16 %v458
    %v539 = vunpack.c.l.b16 %v459
    %v540 = vpack.c.b16 %v495, %v492
    %v541 = vpack.c.b16 %v496, %v493
    %v542 = vpack.c.b16 %v497, %v494
    %v543 = vpack.c.b16 %v501, %v498
    %v544 = vpack.c.b16 %v502, %v499
    %v545 = vpack.c.b16 %v503, %v500
    %v546 = vpack.c.b16 %v507, %v504
    %v547 = vpack.c.b16 %v508, %v505
    %v548 = vpack.c.b16 %v509, %v506
    %v549 = vpack.c.b16 %v513, %v510
    %v550 = vpack.c.b16 %v514, %v511
    %v551 = vpack.c.b16 %v515, %v512
    %v552 = vpack.c.b16 %v519, %v516
    %v553 = vpack.c.b16 %v520, %v517
    %v554 = vpack.c.b16 %v521, %v518
    %v555 = vpack.c.b16 %v525, %v522
    %v556 = vpack.c.b16 %v526, %v523
    %v557 = vpack.c.b16 %v527, %v524
    %v558 = vpack.c.b16 %v531, %v528
    %v559 = vpack.c.b16 %v532, %v529
    %v560 = vpack.c.b16 %v533, %v530
    %v561 = vpack.c.b16 %v537, %v534
    %v562 = vpack.c.b16 %v538, %v535
    %v563 = vpack.c.b16 %v539, %v536
    %588 = vmatpush.bf16.msra.mxu0 %v561
    %589 = vmatpush.bf16.msra.mxu0 %v558
    %590 = vmatpush.bf16.msra.mxu0 %v555
    %591 = vmatpush.bf16.msra.mxu0 %v552
    %592 = vmatpush.bf16.msra.mxu0 %v549
    %593 = vmatpush.bf16.msra.mxu0 %v546
    %594 = vmatpush.bf16.msra.mxu0 %v543
    %595 = vmatpush.bf16.msra.mxu0 %v540
    %596 = vmatmul.bf16.gmra.mxu0 %v427
    %v597 = vpop.f32.mrf.mxu0
    %v598 = vadd.f32 0.0, %v597
    %v599 = vpop.f32.mrf.mxu0
    %600 = vdwg.mxu0
    %601 = vmatpush.bf16.msra.mxu0 %v562
    %602 = vmatpush.bf16.msra.mxu0 %v559
    %603 = vmatpush.bf16.msra.mxu0 %v556
    %604 = vmatpush.bf16.msra.mxu0 %v553
    %605 = vmatpush.bf16.msra.mxu0 %v550
    %606 = vmatpush.bf16.msra.mxu0 %v547
    %607 = vmatpush.bf16.msra.mxu0 %v544
    %608 = vmatpush.bf16.msra.mxu0 %v541
    %609 = vmatmul.bf16.gmra.mxu0 %v427
    %v610 = vpop.f32.mrf.mxu0
    %v611 = vadd.f32 0.0, %v610
    %v612 = vpop.f32.mrf.mxu0
    %613 = vdwg.mxu0
    %614 = vmatpush.bf16.msra.mxu0 %v563
    %615 = vmatpush.bf16.msra.mxu0 %v560
    %616 = vmatpush.bf16.msra.mxu0 %v557
    %617 = vmatpush.bf16.msra.mxu0 %v554
    %618 = vmatpush.bf16.msra.mxu0 %v551
    %619 = vmatpush.bf16.msra.mxu0 %v548
    %620 = vmatpush.bf16.msra.mxu0 %v545
    %621 = vmatpush.bf16.msra.mxu0 %v542
    %622 = vmatmul.bf16.gmra.mxu0 %v427
    %v623 = vpop.f32.mrf.mxu0
    %v624 = vadd.f32 0.0, %v623
    %v625 = vpop.f32.mrf.mxu0
    %626 = vdwg.mxu0
    %v627 = vadd.f32 %v424, %v598
    %v628 = vxor.u32 %v627, 2147483648
    %v629 = vmul.f32 %v628, 1.442695
    %v630 = vpow.pop %v629
    %v631 = vadd.f32 %v630, 1.0
    %v632 = vrcp.pop %v631
    %v633 = vmul.f32 %v631, %v632
    %v634 = vsub.f32 1.0, %v633
    %v635 = vmul.f32 %v632, %v634
    %v636 = vadd.f32 %v632, %v635
    %vm637 = vweird.f32 %v631
    %vm638 = vweird.f32 %v632
    %vm639 = vmor %vm637, %vm638
    %v640 = vsel %vm639, %v632, %v636
    %v641 = vand.u32 2147483647, %v631
    %vm642 = vcmp.eq.f32.partialorder %v641, 8.507059e+37
    %v643 = vand.u32 %v631, 2147483648
    %v644 = vor.u32 1.1754944e-38, %v643
    %v645 = vsel %vm642, %v644, %v640
    %v646 = vmul.f32 1.0, %v645
    %v647 = vadd.f32 %v425, %v611
    %v648 = vxor.u32 %v647, 2147483648
    %v649 = vmul.f32 %v648, 1.442695
    %v650 = vpow.pop %v649
    %v651 = vadd.f32 %v650, 1.0
    %v652 = vrcp.pop %v651
    %v653 = vmul.f32 %v651, %v652
    %v654 = vsub.f32 1.0, %v653
    %v655 = vmul.f32 %v652, %v654
    %v656 = vadd.f32 %v652, %v655
    %vm657 = vweird.f32 %v651
    %vm658 = vweird.f32 %v652
    %vm659 = vmor %vm657, %vm658
    %v660 = vsel %vm659, %v652, %v656
    %v661 = vand.u32 2147483647, %v651
    %vm662 = vcmp.eq.f32.partialorder %v661, 8.507059e+37
    %v663 = vand.u32 %v651, 2147483648
    %v664 = vor.u32 1.1754944e-38, %v663
    %v665 = vsel %vm662, %v664, %v660
    %v666 = vmul.f32 1.0, %v665
    %v668 = vperm.slane %v422, 0
    %v670 = vadd.f32 %v624, %v668
    %v671 = vmul.f32 %v646, %v670
    %v672 = vadd.f32 %v426, %v671
    %v673 = vtanh.pop %v672
    %v674 = vsub.f32 1.0, %v666
    %v675 = vmul.f32 %v674, %v673
    %v676 = vmul.f32 %v666, %v423
    %v677 = vadd.f32 %v675, %v676
    %v678 = vld [vmem:[#allocation4] sm:$0xff]
    %v679 = vsub.f32 %v677, %v423
    %681 = vset.pattern.permute.xlu0 0
    %682 = vperm.xlu0 %681, %v678
    %v683 = vpop.permute.xlu0 %682
    %v685 = vmul.f32 %v683, %v679
    %v686 = vadd.f32 %v423, %v685
    %s687 = scalar_lea.vmem [#allocation3], 24
    %v688 = vld [vmem:[%s687] sm:$0xff]
    %v689 = vld [vmem:[%s687 + $0x8] sm:$0xff]
    %v690 = vld [vmem:[%s687 + $0x10] sm:$0xff]
    %v691 = vpack.c.bf16 %v686, %v686
    %692 = vmatpush.bf16.msra.mxu0 %v561
    %693 = vmatpush.bf16.msra.mxu0 %v558
    %694 = vmatpush.bf16.msra.mxu0 %v555
    %695 = vmatpush.bf16.msra.mxu0 %v552
    %696 = vmatpush.bf16.msra.mxu0 %v549
    %697 = vmatpush.bf16.msra.mxu0 %v546
    %698 = vmatpush.bf16.msra.mxu0 %v543
    %699 = vmatpush.bf16.msra.mxu0 %v540
    %700 = vmatmul.bf16.gmra.mxu0 %v691
    %v701 = vpop.f32.mrf.mxu0
    %v702 = vadd.f32 0.0, %v701
    %v703 = vpop.f32.mrf.mxu0
    %704 = vdwg.mxu0
    %705 = vmatpush.bf16.msra.mxu0 %v562
    %706 = vmatpush.bf16.msra.mxu0 %v559
    %707 = vmatpush.bf16.msra.mxu0 %v556
    %708 = vmatpush.bf16.msra.mxu0 %v553
    %709 = vmatpush.bf16.msra.mxu0 %v550
    %710 = vmatpush.bf16.msra.mxu0 %v547
    %711 = vmatpush.bf16.msra.mxu0 %v544
    %712 = vmatpush.bf16.msra.mxu0 %v541
    %713 = vmatmul.bf16.gmra.mxu0 %v691
    %v714 = vpop.f32.mrf.mxu0
    %v715 = vadd.f32 0.0, %v714
    %v716 = vpop.f32.mrf.mxu0
    %717 = vdwg.mxu0
    %718 = vmatpush.bf16.msra.mxu0 %v563
    %719 = vmatpush.bf16.msra.mxu0 %v560
    %720 = vmatpush.bf16.msra.mxu0 %v557
    %721 = vmatpush.bf16.msra.mxu0 %v554
    %722 = vmatpush.bf16.msra.mxu0 %v551
    %723 = vmatpush.bf16.msra.mxu0 %v548
    %724 = vmatpush.bf16.msra.mxu0 %v545
    %725 = vmatpush.bf16.msra.mxu0 %v542
    %726 = vmatmul.bf16.gmra.mxu0 %v691
    %v727 = vpop.f32.mrf.mxu0
    %v728 = vadd.f32 0.0, %v727
    %v729 = vpop.f32.mrf.mxu0
    %730 = vdwg.mxu0
    %v731 = vadd.f32 %v688, %v702
    %v732 = vxor.u32 %v731, 2147483648
    %v733 = vmul.f32 %v732, 1.442695
    %v734 = vpow.pop %v733
    %v735 = vadd.f32 %v734, 1.0
    %v736 = vrcp.pop %v735
    %v737 = vmul.f32 %v735, %v736
    %v738 = vsub.f32 1.0, %v737
    %v739 = vmul.f32 %v736, %v738
    %v740 = vadd.f32 %v736, %v739
    %vm741 = vweird.f32 %v735
    %vm742 = vweird.f32 %v736
    %vm743 = vmor %vm741, %vm742
    %v744 = vsel %vm743, %v736, %v740
    %v745 = vand.u32 2147483647, %v735
    %vm746 = vcmp.eq.f32.partialorder %v745, 8.507059e+37
    %v747 = vand.u32 %v735, 2147483648
    %v748 = vor.u32 1.1754944e-38, %v747
    %v749 = vsel %vm746, %v748, %v744
    %v750 = vmul.f32 1.0, %v749
    %v751 = vadd.f32 %v689, %v715
    %v752 = vxor.u32 %v751, 2147483648
    %v753 = vmul.f32 %v752, 1.442695
    %v754 = vpow.pop %v753
    %v755 = vadd.f32 %v754, 1.0
    %v756 = vrcp.pop %v755
    %v757 = vmul.f32 %v755, %v756
    %v758 = vsub.f32 1.0, %v757
    %v759 = vmul.f32 %v756, %v758
    %v760 = vadd.f32 %v756, %v759
    %vm761 = vweird.f32 %v755
    %vm762 = vweird.f32 %v756
    %vm763 = vmor %vm761, %vm762
    %v764 = vsel %vm763, %v756, %v760
    %v765 = vand.u32 2147483647, %v755
    %vm766 = vcmp.eq.f32.partialorder %v765, 8.507059e+37
    %v767 = vand.u32 %v755, 2147483648
    %v768 = vor.u32 1.1754944e-38, %v767
    %v769 = vsel %vm766, %v768, %v764
    %v770 = vmul.f32 1.0, %v769
    %v771 = vadd.f32 %v728, %v668
    %v772 = vmul.f32 %v750, %v771
    %v773 = vadd.f32 %v690, %v772
    %v774 = vtanh.pop %v773
    %v775 = vsub.f32 1.0, %v770
    %v776 = vmul.f32 %v775, %v774
    %v777 = vmul.f32 %v770, %v686
    %v778 = vadd.f32 %v776, %v777
    %s779 = scalar_lea.vmem [#allocation4], 8
    %v780 = vld [vmem:[%s779] sm:$0xff]
    %v781 = vsub.f32 %v778, %v686
    %783 = vset.pattern.permute.xlu0 0
    %784 = vperm.xlu0 %783, %v780
    %v785 = vpop.permute.xlu0 %784
    %v787 = vmul.f32 %v785, %v781
    %v788 = vadd.f32 %v686, %v787
    %s789 = scalar_lea.vmem [#allocation3], 48
    %v790 = vld [vmem:[%s789] sm:$0xff]
    %v791 = vld [vmem:[%s789 + $0x8] sm:$0xff]
    %v792 = vld [vmem:[%s789 + $0x10] sm:$0xff]
    %v793 = vpack.c.bf16 %v788, %v788
    %794 = vmatpush.bf16.msra.mxu0 %v561
    %795 = vmatpush.bf16.msra.mxu0 %v558
    %796 = vmatpush.bf16.msra.mxu0 %v555
    %797 = vmatpush.bf16.msra.mxu0 %v552
    %798 = vmatpush.bf16.msra.mxu0 %v549
    %799 = vmatpush.bf16.msra.mxu0 %v546
    %800 = vmatpush.bf16.msra.mxu0 %v543
    %801 = vmatpush.bf16.msra.mxu0 %v540
    %802 = vmatmul.bf16.gmra.mxu0 %v793
    %v803 = vpop.f32.mrf.mxu0
    %v804 = vadd.f32 0.0, %v803
    %v805 = vpop.f32.mrf.mxu0
    %806 = vdwg.mxu0
    %807 = vmatpush.bf16.msra.mxu0 %v562
    %808 = vmatpush.bf16.msra.mxu0 %v559
    %809 = vmatpush.bf16.msra.mxu0 %v556
    %810 = vmatpush.bf16.msra.mxu0 %v553
    %811 = vmatpush.bf16.msra.mxu0 %v550
    %812 = vmatpush.bf16.msra.mxu0 %v547
    %813 = vmatpush.bf16.msra.mxu0 %v544
    %814 = vmatpush.bf16.msra.mxu0 %v541
    %815 = vmatmul.bf16.gmra.mxu0 %v793
    %v816 = vpop.f32.mrf.mxu0
    %v817 = vadd.f32 0.0, %v816
    %v818 = vpop.f32.mrf.mxu0
    %819 = vdwg.mxu0
    %820 = vmatpush.bf16.msra.mxu0 %v563
    %821 = vmatpush.bf16.msra.mxu0 %v560
    %822 = vmatpush.bf16.msra.mxu0 %v557
    %823 = vmatpush.bf16.msra.mxu0 %v554
    %824 = vmatpush.bf16.msra.mxu0 %v551
    %825 = vmatpush.bf16.msra.mxu0 %v548
    %826 = vmatpush.bf16.msra.mxu0 %v545
    %827 = vmatpush.bf16.msra.mxu0 %v542
    %828 = vmatmul.bf16.gmra.mxu0 %v793
    %v829 = vpop.f32.mrf.mxu0
    %v830 = vadd.f32 0.0, %v829
    %v831 = vpop.f32.mrf.mxu0
    %832 = vdwg.mxu0
    %v833 = vadd.f32 %v790, %v804
    %v834 = vxor.u32 %v833, 2147483648
    %v835 = vmul.f32 %v834, 1.442695
    %v836 = vpow.pop %v835
    %v837 = vadd.f32 %v836, 1.0
    %v838 = vrcp.pop %v837
    %v839 = vmul.f32 %v837, %v838
    %v840 = vsub.f32 1.0, %v839
    %v841 = vmul.f32 %v838, %v840
    %v842 = vadd.f32 %v838, %v841
    %vm843 = vweird.f32 %v837
    %vm844 = vweird.f32 %v838
    %vm845 = vmor %vm843, %vm844
    %v846 = vsel %vm845, %v838, %v842
    %v847 = vand.u32 2147483647, %v837
    %vm848 = vcmp.eq.f32.partialorder %v847, 8.507059e+37
    %v849 = vand.u32 %v837, 2147483648
    %v850 = vor.u32 1.1754944e-38, %v849
    %v851 = vsel %vm848, %v850, %v846
    %v852 = vmul.f32 1.0, %v851
    %v853 = vadd.f32 %v791, %v817
    %v854 = vxor.u32 %v853, 2147483648
    %v855 = vmul.f32 %v854, 1.442695
    %v856 = vpow.pop %v855
    %v857 = vadd.f32 %v856, 1.0
    %v858 = vrcp.pop %v857
    %v859 = vmul.f32 %v857, %v858
    %v860 = vsub.f32 1.0, %v859
    %v861 = vmul.f32 %v858, %v860
    %v862 = vadd.f32 %v858, %v861
    %vm863 = vweird.f32 %v857
    %vm864 = vweird.f32 %v858
    %vm865 = vmor %vm863, %vm864
    %v866 = vsel %vm865, %v858, %v862
    %v867 = vand.u32 2147483647, %v857
    %vm868 = vcmp.eq.f32.partialorder %v867, 8.507059e+37
    %v869 = vand.u32 %v857, 2147483648
    %v870 = vor.u32 1.1754944e-38, %v869
    %v871 = vsel %vm868, %v870, %v866
    %v872 = vmul.f32 1.0, %v871
    %v873 = vadd.f32 %v830, %v668
    %v874 = vmul.f32 %v852, %v873
    %v875 = vadd.f32 %v792, %v874
    %v876 = vtanh.pop %v875
    %v877 = vsub.f32 1.0, %v872
    %v878 = vmul.f32 %v877, %v876
    %v879 = vmul.f32 %v872, %v788
    %v880 = vadd.f32 %v878, %v879
    %s881 = scalar_lea.vmem [#allocation4], 16
    %v882 = vld [vmem:[%s881] sm:$0xff]
    %v883 = vsub.f32 %v880, %v788
    %885 = vset.pattern.permute.xlu0 0
    %886 = vperm.xlu0 %885, %v882
    %v887 = vpop.permute.xlu0 %886
    %v889 = vmul.f32 %v887, %v883
    %v890 = vadd.f32 %v788, %v889
    %s891 = scalar_lea.vmem [#allocation3], 72
    %v892 = vld [vmem:[%s891] sm:$0xff]
    %v893 = vld [vmem:[%s891 + $0x8] sm:$0xff]
    %v894 = vld [vmem:[%s891 + $0x10] sm:$0xff]
    %v895 = vpack.c.bf16 %v890, %v890
    %896 = vmatpush.bf16.msra.mxu0 %v561
    %897 = vmatpush.bf16.msra.mxu0 %v558
    %898 = vmatpush.bf16.msra.mxu0 %v555
    %899 = vmatpush.bf16.msra.mxu0 %v552
    %900 = vmatpush.bf16.msra.mxu0 %v549
    %901 = vmatpush.bf16.msra.mxu0 %v546
    %902 = vmatpush.bf16.msra.mxu0 %v543
    %903 = vmatpush.bf16.msra.mxu0 %v540
    %904 = vmatmul.bf16.gmra.mxu0 %v895
    %v905 = vpop.f32.mrf.mxu0
    %v906 = vadd.f32 0.0, %v905
    %v907 = vpop.f32.mrf.mxu0
    %908 = vdwg.mxu0
    %909 = vmatpush.bf16.msra.mxu0 %v562
    %910 = vmatpush.bf16.msra.mxu0 %v559
    %911 = vmatpush.bf16.msra.mxu0 %v556
    %912 = vmatpush.bf16.msra.mxu0 %v553
    %913 = vmatpush.bf16.msra.mxu0 %v550
    %914 = vmatpush.bf16.msra.mxu0 %v547
    %915 = vmatpush.bf16.msra.mxu0 %v544
    %916 = vmatpush.bf16.msra.mxu0 %v541
    %917 = vmatmul.bf16.gmra.mxu0 %v895
    %v918 = vpop.f32.mrf.mxu0
    %v919 = vadd.f32 0.0, %v918
    %v920 = vpop.f32.mrf.mxu0
    %921 = vdwg.mxu0
    %922 = vmatpush.bf16.msra.mxu0 %v563
    %923 = vmatpush.bf16.msra.mxu0 %v560
    %924 = vmatpush.bf16.msra.mxu0 %v557
    %925 = vmatpush.bf16.msra.mxu0 %v554
    %926 = vmatpush.bf16.msra.mxu0 %v551
    %927 = vmatpush.bf16.msra.mxu0 %v548
    %928 = vmatpush.bf16.msra.mxu0 %v545
    %929 = vmatpush.bf16.msra.mxu0 %v542
    %930 = vmatmul.bf16.gmra.mxu0 %v895
    %v931 = vpop.f32.mrf.mxu0
    %v932 = vadd.f32 0.0, %v931
    %v933 = vpop.f32.mrf.mxu0
    %934 = vdwg.mxu0
    %v935 = vadd.f32 %v892, %v906
    %v936 = vxor.u32 %v935, 2147483648
    %v937 = vmul.f32 %v936, 1.442695
    %v938 = vpow.pop %v937
    %v939 = vadd.f32 %v938, 1.0
    %v940 = vrcp.pop %v939
    %v941 = vmul.f32 %v939, %v940
    %v942 = vsub.f32 1.0, %v941
    %v943 = vmul.f32 %v940, %v942
    %v944 = vadd.f32 %v940, %v943
    %vm945 = vweird.f32 %v939
    %vm946 = vweird.f32 %v940
    %vm947 = vmor %vm945, %vm946
    %v948 = vsel %vm947, %v940, %v944
    %v949 = vand.u32 2147483647, %v939
    %vm950 = vcmp.eq.f32.partialorder %v949, 8.507059e+37
    %v951 = vand.u32 %v939, 2147483648
    %v952 = vor.u32 1.1754944e-38, %v951
    %v953 = vsel %vm950, %v952, %v948
    %v954 = vmul.f32 1.0, %v953
    %v955 = vadd.f32 %v893, %v919
    %v956 = vxor.u32 %v955, 2147483648
    %v957 = vmul.f32 %v956, 1.442695
    %v958 = vpow.pop %v957
    %v959 = vadd.f32 %v958, 1.0
    %v960 = vrcp.pop %v959
    %v961 = vmul.f32 %v959, %v960
    %v962 = vsub.f32 1.0, %v961
    %v963 = vmul.f32 %v960, %v962
    %v964 = vadd.f32 %v960, %v963
    %vm965 = vweird.f32 %v959
    %vm966 = vweird.f32 %v960
    %vm967 = vmor %vm965, %vm966
    %v968 = vsel %vm967, %v960, %v964
    %v969 = vand.u32 2147483647, %v959
    %vm970 = vcmp.eq.f32.partialorder %v969, 8.507059e+37
    %v971 = vand.u32 %v959, 2147483648
    %v972 = vor.u32 1.1754944e-38, %v971
    %v973 = vsel %vm970, %v972, %v968
    %v974 = vmul.f32 1.0, %v973
    %v975 = vadd.f32 %v932, %v668
    %v976 = vmul.f32 %v954, %v975
    %v977 = vadd.f32 %v894, %v976
    %v978 = vtanh.pop %v977
    %v979 = vsub.f32 1.0, %v974
    %v980 = vmul.f32 %v979, %v978
    %v981 = vmul.f32 %v974, %v890
    %v982 = vadd.f32 %v980, %v981
    %s983 = scalar_lea.vmem [#allocation4], 24
    %v984 = vld [vmem:[%s983] sm:$0xff]
    %v985 = vsub.f32 %v982, %v890
    %987 = vset.pattern.permute.xlu0 0
    %988 = vperm.xlu0 %987, %v984
    %v989 = vpop.permute.xlu0 %988
    %v991 = vmul.f32 %v989, %v985
    %v992 = vadd.f32 %v890, %v991
    %s993 = scalar_lea.vmem [#allocation3], 96
    %v994 = vld [vmem:[%s993] sm:$0xff]
    %v995 = vld [vmem:[%s993 + $0x8] sm:$0xff]
    %v996 = vld [vmem:[%s993 + $0x10] sm:$0xff]
    %v997 = vpack.c.bf16 %v992, %v992
    %998 = vmatpush.bf16.msra.mxu0 %v561
    %999 = vmatpush.bf16.msra.mxu0 %v558
    %1000 = vmatpush.bf16.msra.mxu0 %v555
    %1001 = vmatpush.bf16.msra.mxu0 %v552
    %1002 = vmatpush.bf16.msra.mxu0 %v549
    %1003 = vmatpush.bf16.msra.mxu0 %v546
    %1004 = vmatpush.bf16.msra.mxu0 %v543
    %1005 = vmatpush.bf16.msra.mxu0 %v540
    %1006 = vmatmul.bf16.gmra.mxu0 %v997
    %v1007 = vpop.f32.mrf.mxu0
    %v1008 = vadd.f32 0.0, %v1007
    %v1009 = vpop.f32.mrf.mxu0
    %1010 = vdwg.mxu0
    %1011 = vmatpush.bf16.msra.mxu0 %v562
    %1012 = vmatpush.bf16.msra.mxu0 %v559
    %1013 = vmatpush.bf16.msra.mxu0 %v556
    %1014 = vmatpush.bf16.msra.mxu0 %v553
    %1015 = vmatpush.bf16.msra.mxu0 %v550
    %1016 = vmatpush.bf16.msra.mxu0 %v547
    %1017 = vmatpush.bf16.msra.mxu0 %v544
    %1018 = vmatpush.bf16.msra.mxu0 %v541
    %1019 = vmatmul.bf16.gmra.mxu0 %v997
    %v1020 = vpop.f32.mrf.mxu0
    %v1021 = vadd.f32 0.0, %v1020
    %v1022 = vpop.f32.mrf.mxu0
    %1023 = vdwg.mxu0
    %1024 = vmatpush.bf16.msra.mxu0 %v563
    %1025 = vmatpush.bf16.msra.mxu0 %v560
    %1026 = vmatpush.bf16.msra.mxu0 %v557
    %1027 = vmatpush.bf16.msra.mxu0 %v554
    %1028 = vmatpush.bf16.msra.mxu0 %v551
    %1029 = vmatpush.bf16.msra.mxu0 %v548
    %1030 = vmatpush.bf16.msra.mxu0 %v545
    %1031 = vmatpush.bf16.msra.mxu0 %v542
    %1032 = vmatmul.bf16.gmra.mxu0 %v997
    %v1033 = vpop.f32.mrf.mxu0
    %v1034 = vadd.f32 0.0, %v1033
    %v1035 = vpop.f32.mrf.mxu0
    %1036 = vdwg.mxu0
    %v1037 = vadd.f32 %v994, %v1008
    %v1038 = vxor.u32 %v1037, 2147483648
    %v1039 = vmul.f32 %v1038, 1.442695
    %v1040 = vpow.pop %v1039
    %v1041 = vadd.f32 %v1040, 1.0
    %v1042 = vrcp.pop %v1041
    %v1043 = vmul.f32 %v1041, %v1042
    %v1044 = vsub.f32 1.0, %v1043
    %v1045 = vmul.f32 %v1042, %v1044
    %v1046 = vadd.f32 %v1042, %v1045
    %vm1047 = vweird.f32 %v1041
    %vm1048 = vweird.f32 %v1042
    %vm1049 = vmor %vm1047, %vm1048
    %v1050 = vsel %vm1049, %v1042, %v1046
    %v1051 = vand.u32 2147483647, %v1041
    %vm1052 = vcmp.eq.f32.partialorder %v1051, 8.507059e+37
    %v1053 = vand.u32 %v1041, 2147483648
    %v1054 = vor.u32 1.1754944e-38, %v1053
    %v1055 = vsel %vm1052, %v1054, %v1050
    %v1056 = vmul.f32 1.0, %v1055
    %v1057 = vadd.f32 %v995, %v1021
    %v1058 = vxor.u32 %v1057, 2147483648
    %v1059 = vmul.f32 %v1058, 1.442695
    %v1060 = vpow.pop %v1059
    %v1061 = vadd.f32 %v1060, 1.0
    %v1062 = vrcp.pop %v1061
    %v1063 = vmul.f32 %v1061, %v1062
    %v1064 = vsub.f32 1.0, %v1063
    %v1065 = vmul.f32 %v1062, %v1064
    %v1066 = vadd.f32 %v1062, %v1065
    %vm1067 = vweird.f32 %v1061
    %vm1068 = vweird.f32 %v1062
    %vm1069 = vmor %vm1067, %vm1068
    %v1070 = vsel %vm1069, %v1062, %v1066
    %v1071 = vand.u32 2147483647, %v1061
    %vm1072 = vcmp.eq.f32.partialorder %v1071, 8.507059e+37
    %v1073 = vand.u32 %v1061, 2147483648
    %v1074 = vor.u32 1.1754944e-38, %v1073
    %v1075 = vsel %vm1072, %v1074, %v1070
    %v1076 = vmul.f32 1.0, %v1075
    %v1077 = vadd.f32 %v1034, %v668
    %v1078 = vmul.f32 %v1056, %v1077
    %v1079 = vadd.f32 %v996, %v1078
    %v1080 = vtanh.pop %v1079
    %v1081 = vsub.f32 1.0, %v1076
    %v1082 = vmul.f32 %v1081, %v1080
    %v1083 = vmul.f32 %v1076, %v992
    %v1084 = vadd.f32 %v1082, %v1083
    %s1085 = scalar_lea.vmem [#allocation4], 32
    %v1086 = vld [vmem:[%s1085] sm:$0xff]
    %v1087 = vsub.f32 %v1084, %v992
    %1089 = vset.pattern.permute.xlu0 0
    %1090 = vperm.xlu0 %1089, %v1086
    %v1091 = vpop.permute.xlu0 %1090
    %v1093 = vmul.f32 %v1091, %v1087
    %v1094 = vadd.f32 %v992, %v1093
    %s1095 = scalar_lea.vmem [#allocation3], 120
    %v1096 = vld [vmem:[%s1095] sm:$0xff]
    %v1097 = vld [vmem:[%s1095 + $0x8] sm:$0xff]
    %v1098 = vld [vmem:[%s1095 + $0x10] sm:$0xff]
    %v1099 = vpack.c.bf16 %v1094, %v1094
    %1100 = vmatpush.bf16.msra.mxu0 %v561
    %1101 = vmatpush.bf16.msra.mxu0 %v558
    %1102 = vmatpush.bf16.msra.mxu0 %v555
    %1103 = vmatpush.bf16.msra.mxu0 %v552
    %1104 = vmatpush.bf16.msra.mxu0 %v549
    %1105 = vmatpush.bf16.msra.mxu0 %v546
    %1106 = vmatpush.bf16.msra.mxu0 %v543
    %1107 = vmatpush.bf16.msra.mxu0 %v540
    %1108 = vmatmul.bf16.gmra.mxu0 %v1099
    %v1109 = vpop.f32.mrf.mxu0
    %v1110 = vadd.f32 0.0, %v1109
    %v1111 = vpop.f32.mrf.mxu0
    %1112 = vdwg.mxu0
    %1113 = vmatpush.bf16.msra.mxu0 %v562
    %1114 = vmatpush.bf16.msra.mxu0 %v559
    %1115 = vmatpush.bf16.msra.mxu0 %v556
    %1116 = vmatpush.bf16.msra.mxu0 %v553
    %1117 = vmatpush.bf16.msra.mxu0 %v550
    %1118 = vmatpush.bf16.msra.mxu0 %v547
    %1119 = vmatpush.bf16.msra.mxu0 %v544
    %1120 = vmatpush.bf16.msra.mxu0 %v541
    %1121 = vmatmul.bf16.gmra.mxu0 %v1099
    %v1122 = vpop.f32.mrf.mxu0
    %v1123 = vadd.f32 0.0, %v1122
    %v1124 = vpop.f32.mrf.mxu0
    %1125 = vdwg.mxu0
    %1126 = vmatpush.bf16.msra.mxu0 %v563
    %1127 = vmatpush.bf16.msra.mxu0 %v560
    %1128 = vmatpush.bf16.msra.mxu0 %v557
    %1129 = vmatpush.bf16.msra.mxu0 %v554
    %1130 = vmatpush.bf16.msra.mxu0 %v551
    %1131 = vmatpush.bf16.msra.mxu0 %v548
    %1132 = vmatpush.bf16.msra.mxu0 %v545
    %1133 = vmatpush.bf16.msra.mxu0 %v542
    %1134 = vmatmul.bf16.gmra.mxu0 %v1099
    %v1135 = vpop.f32.mrf.mxu0
    %v1136 = vadd.f32 0.0, %v1135
    %v1137 = vpop.f32.mrf.mxu0
    %1138 = vdwg.mxu0
    %v1139 = vadd.f32 %v1096, %v1110
    %v1140 = vxor.u32 %v1139, 2147483648
    %v1141 = vmul.f32 %v1140, 1.442695
    %v1142 = vpow.pop %v1141
    %v1143 = vadd.f32 %v1142, 1.0
    %v1144 = vrcp.pop %v1143
    %v1145 = vmul.f32 %v1143, %v1144
    %v1146 = vsub.f32 1.0, %v1145
    %v1147 = vmul.f32 %v1144, %v1146
    %v1148 = vadd.f32 %v1144, %v1147
    %vm1149 = vweird.f32 %v1143
    %vm1150 = vweird.f32 %v1144
    %vm1151 = vmor %vm1149, %vm1150
    %v1152 = vsel %vm1151, %v1144, %v1148
    %v1153 = vand.u32 2147483647, %v1143
    %vm1154 = vcmp.eq.f32.partialorder %v1153, 8.507059e+37
    %v1155 = vand.u32 %v1143, 2147483648
    %v1156 = vor.u32 1.1754944e-38, %v1155
    %v1157 = vsel %vm1154, %v1156, %v1152
    %v1158 = vmul.f32 1.0, %v1157
    %v1159 = vadd.f32 %v1097, %v1123
    %v1160 = vxor.u32 %v1159, 2147483648
    %v1161 = vmul.f32 %v1160, 1.442695
    %v1162 = vpow.pop %v1161
    %v1163 = vadd.f32 %v1162, 1.0
    %v1164 = vrcp.pop %v1163
    %v1165 = vmul.f32 %v1163, %v1164
    %v1166 = vsub.f32 1.0, %v1165
    %v1167 = vmul.f32 %v1164, %v1166
    %v1168 = vadd.f32 %v1164, %v1167
    %vm1169 = vweird.f32 %v1163
    %vm1170 = vweird.f32 %v1164
    %vm1171 = vmor %vm1169, %vm1170
    %v1172 = vsel %vm1171, %v1164, %v1168
    %v1173 = vand.u32 2147483647, %v1163
    %vm1174 = vcmp.eq.f32.partialorder %v1173, 8.507059e+37
    %v1175 = vand.u32 %v1163, 2147483648
    %v1176 = vor.u32 1.1754944e-38, %v1175
    %v1177 = vsel %vm1174, %v1176, %v1172
    %v1178 = vmul.f32 1.0, %v1177
    %v1179 = vadd.f32 %v1136, %v668
    %v1180 = vmul.f32 %v1158, %v1179
    %v1181 = vadd.f32 %v1098, %v1180
    %v1182 = vtanh.pop %v1181
    %v1183 = vsub.f32 1.0, %v1178
    %v1184 = vmul.f32 %v1183, %v1182
    %v1185 = vmul.f32 %v1178, %v1094
    %v1186 = vadd.f32 %v1184, %v1185
    %s1187 = scalar_lea.vmem [#allocation4], 40
    %v1188 = vld [vmem:[%s1187] sm:$0xff]
    %v1189 = vsub.f32 %v1186, %v1094
    %1191 = vset.pattern.permute.xlu0 0
    %1192 = vperm.xlu0 %1191, %v1188
    %v1193 = vpop.permute.xlu0 %1192
    %v1195 = vmul.f32 %v1193, %v1189
    %v1196 = vadd.f32 %v1094, %v1195
    %s1197 = scalar_lea.vmem [#allocation3], 144
    %v1198 = vld [vmem:[%s1197] sm:$0xff]
    %v1199 = vld [vmem:[%s1197 + $0x8] sm:$0xff]
    %v1200 = vld [vmem:[%s1197 + $0x10] sm:$0xff]
    %v1201 = vpack.c.bf16 %v1196, %v1196
    %1202 = vmatpush.bf16.msra.mxu0 %v561
    %1203 = vmatpush.bf16.msra.mxu0 %v558
    %1204 = vmatpush.bf16.msra.mxu0 %v555
    %1205 = vmatpush.bf16.msra.mxu0 %v552
    %1206 = vmatpush.bf16.msra.mxu0 %v549
    %1207 = vmatpush.bf16.msra.mxu0 %v546
    %1208 = vmatpush.bf16.msra.mxu0 %v543
    %1209 = vmatpush.bf16.msra.mxu0 %v540
    %1210 = vmatmul.bf16.gmra.mxu0 %v1201
    %v1211 = vpop.f32.mrf.mxu0
    %v1212 = vadd.f32 0.0, %v1211
    %v1213 = vpop.f32.mrf.mxu0
    %1214 = vdwg.mxu0
    %1215 = vmatpush.bf16.msra.mxu0 %v562
    %1216 = vmatpush.bf16.msra.mxu0 %v559
    %1217 = vmatpush.bf16.msra.mxu0 %v556
    %1218 = vmatpush.bf16.msra.mxu0 %v553
    %1219 = vmatpush.bf16.msra.mxu0 %v550
    %1220 = vmatpush.bf16.msra.mxu0 %v547
    %1221 = vmatpush.bf16.msra.mxu0 %v544
    %1222 = vmatpush.bf16.msra.mxu0 %v541
    %1223 = vmatmul.bf16.gmra.mxu0 %v1201
    %v1224 = vpop.f32.mrf.mxu0
    %v1225 = vadd.f32 0.0, %v1224
    %v1226 = vpop.f32.mrf.mxu0
    %1227 = vdwg.mxu0
    %1228 = vmatpush.bf16.msra.mxu0 %v563
    %1229 = vmatpush.bf16.msra.mxu0 %v560
    %1230 = vmatpush.bf16.msra.mxu0 %v557
    %1231 = vmatpush.bf16.msra.mxu0 %v554
    %1232 = vmatpush.bf16.msra.mxu0 %v551
    %1233 = vmatpush.bf16.msra.mxu0 %v548
    %1234 = vmatpush.bf16.msra.mxu0 %v545
    %1235 = vmatpush.bf16.msra.mxu0 %v542
    %1236 = vmatmul.bf16.gmra.mxu0 %v1201
    %v1237 = vpop.f32.mrf.mxu0
    %v1238 = vadd.f32 0.0, %v1237
    %v1239 = vpop.f32.mrf.mxu0
    %1240 = vdwg.mxu0
    %v1241 = vadd.f32 %v1198, %v1212
    %v1242 = vxor.u32 %v1241, 2147483648
    %v1243 = vmul.f32 %v1242, 1.442695
    %v1244 = vpow.pop %v1243
    %v1245 = vadd.f32 %v1244, 1.0
    %v1246 = vrcp.pop %v1245
    %v1247 = vmul.f32 %v1245, %v1246
    %v1248 = vsub.f32 1.0, %v1247
    %v1249 = vmul.f32 %v1246, %v1248
    %v1250 = vadd.f32 %v1246, %v1249
    %vm1251 = vweird.f32 %v1245
    %vm1252 = vweird.f32 %v1246
    %vm1253 = vmor %vm1251, %vm1252
    %v1254 = vsel %vm1253, %v1246, %v1250
    %v1255 = vand.u32 2147483647, %v1245
    %vm1256 = vcmp.eq.f32.partialorder %v1255, 8.507059e+37
    %v1257 = vand.u32 %v1245, 2147483648
    %v1258 = vor.u32 1.1754944e-38, %v1257
    %v1259 = vsel %vm1256, %v1258, %v1254
    %v1260 = vmul.f32 1.0, %v1259
    %v1261 = vadd.f32 %v1199, %v1225
    %v1262 = vxor.u32 %v1261, 2147483648
    %v1263 = vmul.f32 %v1262, 1.442695
    %v1264 = vpow.pop %v1263
    %v1265 = vadd.f32 %v1264, 1.0
    %v1266 = vrcp.pop %v1265
    %v1267 = vmul.f32 %v1265, %v1266
    %v1268 = vsub.f32 1.0, %v1267
    %v1269 = vmul.f32 %v1266, %v1268
    %v1270 = vadd.f32 %v1266, %v1269
    %vm1271 = vweird.f32 %v1265
    %vm1272 = vweird.f32 %v1266
    %vm1273 = vmor %vm1271, %vm1272
    %v1274 = vsel %vm1273, %v1266, %v1270
    %v1275 = vand.u32 2147483647, %v1265
    %vm1276 = vcmp.eq.f32.partialorder %v1275, 8.507059e+37
    %v1277 = vand.u32 %v1265, 2147483648
    %v1278 = vor.u32 1.1754944e-38, %v1277
    %v1279 = vsel %vm1276, %v1278, %v1274
    %v1280 = vmul.f32 1.0, %v1279
    %v1281 = vadd.f32 %v1238, %v668
    %v1282 = vmul.f32 %v1260, %v1281
    %v1283 = vadd.f32 %v1200, %v1282
    %v1284 = vtanh.pop %v1283
    %v1285 = vsub.f32 1.0, %v1280
    %v1286 = vmul.f32 %v1285, %v1284
    %v1287 = vmul.f32 %v1280, %v1196
    %v1288 = vadd.f32 %v1286, %v1287
    %s1289 = scalar_lea.vmem [#allocation4], 48
    %v1290 = vld [vmem:[%s1289] sm:$0xff]
    %v1291 = vsub.f32 %v1288, %v1196
    %1293 = vset.pattern.permute.xlu0 0
    %1294 = vperm.xlu0 %1293, %v1290
    %v1295 = vpop.permute.xlu0 %1294
    %v1297 = vmul.f32 %v1295, %v1291
    %v1298 = vadd.f32 %v1196, %v1297
    %s1299 = scalar_lea.vmem [#allocation3], 168
    %v1300 = vld [vmem:[%s1299] sm:$0xff]
    %v1301 = vld [vmem:[%s1299 + $0x8] sm:$0xff]
    %v1302 = vld [vmem:[%s1299 + $0x10] sm:$0xff]
    %v1303 = vpack.c.bf16 %v1298, %v1298
    %1304 = vmatpush.bf16.msra.mxu0 %v561
    %1305 = vmatpush.bf16.msra.mxu0 %v558
    %1306 = vmatpush.bf16.msra.mxu0 %v555
    %1307 = vmatpush.bf16.msra.mxu0 %v552
    %1308 = vmatpush.bf16.msra.mxu0 %v549
    %1309 = vmatpush.bf16.msra.mxu0 %v546
    %1310 = vmatpush.bf16.msra.mxu0 %v543
    %1311 = vmatpush.bf16.msra.mxu0 %v540
    %1312 = vmatmul.bf16.gmra.mxu0 %v1303
    %v1313 = vpop.f32.mrf.mxu0
    %v1314 = vadd.f32 0.0, %v1313
    %v1315 = vpop.f32.mrf.mxu0
    %1316 = vdwg.mxu0
    %1317 = vmatpush.bf16.msra.mxu0 %v562
    %1318 = vmatpush.bf16.msra.mxu0 %v559
    %1319 = vmatpush.bf16.msra.mxu0 %v556
    %1320 = vmatpush.bf16.msra.mxu0 %v553
    %1321 = vmatpush.bf16.msra.mxu0 %v550
    %1322 = vmatpush.bf16.msra.mxu0 %v547
    %1323 = vmatpush.bf16.msra.mxu0 %v544
    %1324 = vmatpush.bf16.msra.mxu0 %v541
    %1325 = vmatmul.bf16.gmra.mxu0 %v1303
    %v1326 = vpop.f32.mrf.mxu0
    %v1327 = vadd.f32 0.0, %v1326
    %v1328 = vpop.f32.mrf.mxu0
    %1329 = vdwg.mxu0
    %1330 = vmatpush.bf16.msra.mxu0 %v563
    %1331 = vmatpush.bf16.msra.mxu0 %v560
    %1332 = vmatpush.bf16.msra.mxu0 %v557
    %1333 = vmatpush.bf16.msra.mxu0 %v554
    %1334 = vmatpush.bf16.msra.mxu0 %v551
    %1335 = vmatpush.bf16.msra.mxu0 %v548
    %1336 = vmatpush.bf16.msra.mxu0 %v545
    %1337 = vmatpush.bf16.msra.mxu0 %v542
    %1338 = vmatmul.bf16.gmra.mxu0 %v1303
    %v1339 = vpop.f32.mrf.mxu0
    %v1340 = vadd.f32 0.0, %v1339
    %v1341 = vpop.f32.mrf.mxu0
    %1342 = vdwg.mxu0
    %v1343 = vadd.f32 %v1300, %v1314
    %v1344 = vxor.u32 %v1343, 2147483648
    %v1345 = vmul.f32 %v1344, 1.442695
    %v1346 = vpow.pop %v1345
    %v1347 = vadd.f32 %v1346, 1.0
    %v1348 = vrcp.pop %v1347
    %v1349 = vmul.f32 %v1347, %v1348
    %v1350 = vsub.f32 1.0, %v1349
    %v1351 = vmul.f32 %v1348, %v1350
    %v1352 = vadd.f32 %v1348, %v1351
    %vm1353 = vweird.f32 %v1347
    %vm1354 = vweird.f32 %v1348
    %vm1355 = vmor %vm1353, %vm1354
    %v1356 = vsel %vm1355, %v1348, %v1352
    %v1357 = vand.u32 2147483647, %v1347
    %vm1358 = vcmp.eq.f32.partialorder %v1357, 8.507059e+37
    %v1359 = vand.u32 %v1347, 2147483648
    %v1360 = vor.u32 1.1754944e-38, %v1359
    %v1361 = vsel %vm1358, %v1360, %v1356
    %v1362 = vmul.f32 1.0, %v1361
    %v1363 = vadd.f32 %v1301, %v1327
    %v1364 = vxor.u32 %v1363, 2147483648
    %v1365 = vmul.f32 %v1364, 1.442695
    %v1366 = vpow.pop %v1365
    %v1367 = vadd.f32 %v1366, 1.0
    %v1368 = vrcp.pop %v1367
    %v1369 = vmul.f32 %v1367, %v1368
    %v1370 = vsub.f32 1.0, %v1369
    %v1371 = vmul.f32 %v1368, %v1370
    %v1372 = vadd.f32 %v1368, %v1371
    %vm1373 = vweird.f32 %v1367
    %vm1374 = vweird.f32 %v1368
    %vm1375 = vmor %vm1373, %vm1374
    %v1376 = vsel %vm1375, %v1368, %v1372
    %v1377 = vand.u32 2147483647, %v1367
    %vm1378 = vcmp.eq.f32.partialorder %v1377, 8.507059e+37
    %v1379 = vand.u32 %v1367, 2147483648
    %v1380 = vor.u32 1.1754944e-38, %v1379
    %v1381 = vsel %vm1378, %v1380, %v1376
    %v1382 = vmul.f32 1.0, %v1381
    %v1383 = vadd.f32 %v1340, %v668
    %v1384 = vmul.f32 %v1362, %v1383
    %v1385 = vadd.f32 %v1302, %v1384
    %v1386 = vtanh.pop %v1385
    %v1387 = vsub.f32 1.0, %v1382
    %v1388 = vmul.f32 %v1387, %v1386
    %v1389 = vmul.f32 %v1382, %v1298
    %v1390 = vadd.f32 %v1388, %v1389
    %s1391 = scalar_lea.vmem [#allocation4], 56
    %v1392 = vld [vmem:[%s1391] sm:$0xff]
    %v1393 = vsub.f32 %v1390, %v1298
    %1395 = vset.pattern.permute.xlu0 0
    %1396 = vperm.xlu0 %1395, %v1392
    %v1397 = vpop.permute.xlu0 %1396
    %v1399 = vmul.f32 %v1397, %v1393
    %v1400 = vadd.f32 %v1298, %v1399
    %1401 = vst [vmem:[#allocation2] sm:$0xff] %v1400
    // Predicated region
    $region46: #{tpu_custom_call.1} parent=1 // pred_check
      %p1402 = pneg %p63
    $region47: #{tpu_custom_call.1} parent=1 // pred_check_branch
      %1404 = sbr.rel (%p1402) target = $region49
    $region48: #{tpu_custom_call.1} parent=1 // pred_region
      %v1405 = vld [vmem:[#allocation2] sm:$0xff]
      %v1406 = vld [vmem:[%s6] sm:$0xff]
      %v1407 = vld [vmem:[%s6 + $0x8] sm:$0xff]
      %v1408 = vld [vmem:[%s6 + $0x10] sm:$0xff]
      %v1409 = vld [vmem:[%s6 + $0x18] sm:$0xff]
      %v1410 = vld [vmem:[%s6 + $0x20] sm:$0xff]
      %v1411 = vld [vmem:[%s6 + $0x28] sm:$0xff]
      %v1412 = vld [vmem:[%s6 + $0x30] sm:$0xff]
      %v1413 = vld [vmem:[%s6 + $0x38] sm:$0xff]
      %v1414 = vld [vmem:[%s6 + $0x40] sm:$0xff]
      %v1415 = vld [vmem:[%s6 + $0x48] sm:$0xff]
      %v1416 = vld [vmem:[%s6 + $0x50] sm:$0xff]
      %v1417 = vld [vmem:[%s6 + $0x58] sm:$0xff]
      %v1418 = vld [vmem:[%s6 + $0x60] sm:$0xff]
      %v1419 = vld [vmem:[%s6 + $0x68] sm:$0xff]
      %v1420 = vld [vmem:[%s6 + $0x70] sm:$0xff]
      %v1421 = vld [vmem:[%s6 + $0x78] sm:$0xff]
      %v1422 = vld [vmem:[#allocation5] sm:$0x1]
      %v1424 = vperm.slane %v1422, 0
      %1426 = vmatpush.msra.mxu0 %v1421
      %1427 = vmatpush.msra.mxu0 %v1420
      %1428 = vmatpush.msra.mxu0 %v1419
      %1429 = vmatpush.msra.mxu0 %v1418
      %1430 = vmatpush.msra.mxu0 %v1417
      %1431 = vmatpush.msra.mxu0 %v1416
      %1432 = vmatpush.msra.mxu0 %v1415
      %1433 = vmatpush.msra.mxu0 %v1414
      %1434 = vmatpush.msra.mxu0 %v1413
      %1435 = vmatpush.msra.mxu0 %v1412
      %1436 = vmatpush.msra.mxu0 %v1411
      %1437 = vmatpush.msra.mxu0 %v1410
      %1438 = vmatpush.msra.mxu0 %v1409
      %1439 = vmatpush.msra.mxu0 %v1408
      %1440 = vmatpush.msra.mxu0 %v1407
      %1441 = vmatpush.msra.mxu0 %v1406
      %1442 = vmatmul.f32.gmra.mxu0 %v1405
      %v1443 = vpop.f32.mrf.mxu0
      %v1444 = vadd.f32 %v1424, %v1443
      %1445 = vdwg.mxu0
      %v1446 = vxor.u32 %v1444, 2147483648
      %v1447 = vmul.f32 %v1446, 1.442695
      %v1448 = vpow.pop %v1447
      %v1449 = vadd.f32 %v1448, 1.0
      %v1450 = vrcp.pop %v1449
      %v1451 = vmul.f32 %v1449, %v1450
      %v1452 = vsub.f32 1.0, %v1451
      %v1453 = vmul.f32 %v1450, %v1452
      %v1454 = vadd.f32 %v1450, %v1453
      %vm1455 = vweird.f32 %v1449
      %vm1456 = vweird.f32 %v1450
      %vm1457 = vmor %vm1455, %vm1456
      %v1458 = vsel %vm1457, %v1450, %v1454
      %v1459 = vand.u32 2147483647, %v1449
      %vm1460 = vcmp.eq.f32.partialorder %v1459, 8.507059e+37
      %v1461 = vand.u32 %v1449, 2147483648
      %v1462 = vor.u32 1.1754944e-38, %v1461
      %v1463 = vsel %vm1460, %v1462, %v1458
      %v1464 = vmul.f32 1.0, %v1463
      %1465 = vst.msk [vmem:[%s8] sm:$0xff] %vm413, %v1464
    $region49: #{tpu_custom_call.1} parent=1 // pred_fallthru
      _
    // Predicated region
    $region50: #{tpu_custom_call.1} parent=1 // pred_check
      _
    $region51: #{tpu_custom_call.1} parent=1 // pred_check_branch
      %1467 = sbr.rel (0) target = $region53
    $region52: #{tpu_custom_call.1} parent=1 // pred_region
      _
    $region53: #{tpu_custom_call.1} parent=1 // pred_fallthru
      _
    // Predicated region
    $region54: #{tpu_custom_call.1} parent=1 // pred_check
      _
    $region55: #{tpu_custom_call.1} parent=1 // pred_check_branch
      %1469 = sbr.rel (0) target = $region57
    $region56: #{tpu_custom_call.1} parent=1 // pred_region
      _
    $region57: #{tpu_custom_call.1} parent=1 // pred_fallthru
      _
    %1470 = vsyncpa [#allocation7], 1
    %1471 = vsyncpa [#allocation9], 1

</llo_original>
